<compile_context>
chip_gen: v7x
topology: tpu7x:2x2x1
jax: 0.10.0
libtpu: 0.0.40
codegen_flags: <defaults>
</compile_context>

<pallas_src>
import functools
from math import sqrt

import jax
import jax.numpy as jnp
from jax.experimental import pallas as pl
from jax.experimental.pallas import tpu as pltpu


_VMEM = pl.BlockSpec(memory_space=pltpu.MemorySpace.VMEM)


def _round_up(v, m):
    return ((v + m - 1) // m) * m


# ----------------------------------------------------------------------------
# Static packed-weight layouts (shared by pack_params and the kernel factory)
# ----------------------------------------------------------------------------
def _lstm_row_layout(input_dim, H, n_layers):
    """Row offsets of the [A | C | Whh] blocks per layer in the packed bf16 weight."""
    entries = []
    r = 0
    d0 = _round_up(input_dim, 8)
    for l in range(n_layers):
        din = d0 if l == 0 else 2 * H
        blk = _round_up(din, 16)                    # bf16 sublane-tile aligned
        off_a = r; r += blk
        off_c = r; r += blk
        off_w = r; r += _round_up(2 * H, 16)
        entries.append((off_a, off_c, off_w, din))
    return entries, r


def _mlp_row_layout(mlp_dims):
    """Row offsets of [W | b] blocks per MLP linear in the packed f32 weight."""
    lane_w = _round_up(max(dout for _, dout in mlp_dims), 128)
    entries = []
    r = 0
    for din, dout in mlp_dims:
        w_off = r; r += _round_up(din, 8)
        b_off = r; r += 8
        entries.append((w_off, b_off, din, dout))
    return entries, r, lane_w


# ----------------------------------------------------------------------------
# Fused kernel factory
# ----------------------------------------------------------------------------
def _make_fused_kernel(n_layers, T, B, H, lstm_entries, mlp_entries, n_mlp):
    H2 = 2 * H

    def kernel(x_ref, lw_ref, lb_ref, mlp_ref, out_ref, hseq_ref):
        # Gate column layout (width 8H): [i_f i_b | f_f f_b | g_f g_b | o_f o_b]
        # Hidden/cell layout (width 2H): [fwd | bwd]

        def run_layer(inp_flat, l, store_seq):
            off_a, off_c, off_w, din = lstm_entries[l]
            a_w = lw_ref[off_a:off_a + din, :]          # (din, 8H) bf16
            c_w = lw_ref[off_c:off_c + din, :]          # (din, 8H) bf16
            r_w = lw_ref[off_w:off_w + H2, :]           # (2H, 8H) bf16 block-diagonal
            bias = lb_ref[l:l + 1, :]                   # (1, 8H) f32

            # Hoisted input projections for ALL timesteps (off the serial path).
            gx_a = jnp.dot(inp_flat, a_w, preferred_element_type=jnp.float32)  # (T*B, 8H)
            gx_c = jnp.dot(inp_flat, c_w, preferred_element_type=jnp.float32)  # (T*B, 8H)
            # Step-ordered per-step gate inputs: fwd half uses position t,
            # bwd half uses position T-1-t; sums precomputed off the recurrence chain.
            gstep = [gx_a[t * B:(t + 1) * B, :]
                     + gx_c[(T - 1 - t) * B:(T - t) * B, :]
                     + bias
                     for t in range(T)]

            h32 = jnp.zeros((B, H2), jnp.float32)       # [h_fwd | h_bwd]
            c32 = jnp.zeros((B, H2), jnp.float32)
            h16 = h32.astype(jnp.bfloat16)
            hb_last = None
            for t in range(T):                          # fully unrolled (T is small)
                if t == 0:
                    gates = gstep[0]                    # h == 0 -> recurrent dot skipped
                else:
                    gates = gstep[t] + jnp.dot(h16, r_w,
                                               preferred_element_type=jnp.float32)
                ig = jax.nn.sigmoid(gates[:, 0 * H2:1 * H2])
                fg = jax.nn.sigmoid(gates[:, 1 * H2:2 * H2])
                gg = jnp.tanh(gates[:, 2 * H2:3 * H2])
                og = jax.nn.sigmoid(gates[:, 3 * H2:4 * H2])
                c32 = fg * c32 + ig * gg
                h32 = og * jnp.tanh(c32)
                h16 = h32.astype(jnp.bfloat16)          # reused by next dot AND the store
                if t == 0:
                    hb_last = h32[:, H:H2]              # bwd hidden at position T-1
                if store_seq:
                    hseq_ref[t * B:(t + 1) * B, :] = h16
            return h32[:, 0:H], hb_last

        hf_fin, hb_last = run_layer(x_ref[...], 0, n_layers > 1)
        for l in range(1, n_layers):
            hf_fin, hb_last = run_layer(hseq_ref[...], l, l < n_layers - 1)

        # MLP head on output[:, -1, :] = [h_fwd(T-1) | h_bwd(T-1)];
        # the concat is fused into two dots against the split first weight.
        w_off, b_off, _, dout = mlp_entries[0]
        act = (jnp.dot(hf_fin, mlp_ref[w_off:w_off + H, 0:dout],
                       preferred_element_type=jnp.float32)
               + jnp.dot(hb_last, mlp_ref[w_off + H:w_off + H2, 0:dout],
                         preferred_element_type=jnp.float32)
               + mlp_ref[b_off:b_off + 1, 0:dout])
        for idx in range(1, n_mlp):
            act = jnp.maximum(act, 0.0)
            w_off, b_off, din, dout = mlp_entries[idx]
            act = (jnp.dot(act, mlp_ref[w_off:w_off + din, 0:dout],
                           preferred_element_type=jnp.float32)
                   + mlp_ref[b_off:b_off + 1, 0:dout])
        out_ref[...] = act

    return kernel


# ----------------------------------------------------------------------------
# One-time parameter packing (NOT per call)
# ----------------------------------------------------------------------------
def pack_params(params, input_dim):
    lstm = params["lstm"]
    mlp = params["mlp"]
    n_layers = len(lstm)
    H = lstm[0]["fwd"]["whhT"].shape[0]
    G = 8 * H

    def scatter(m, direction):
        # (rows, 4H) torch [i f g o]  ->  (rows, 8H) [i_f i_b f_f f_b g_f g_b o_f o_b]
        rows = m.shape[0]
        out = jnp.zeros((rows, G), jnp.float32)
        base = H if direction == "bwd" else 0
        for gi in range(4):
            out = out.at[:, 2 * gi * H + base:2 * gi * H + base + H].set(
                m[:, gi * H:(gi + 1) * H])
        return out

    entries, rows_total = _lstm_row_layout(input_dim, H, n_layers)
    lw = jnp.zeros((rows_total, G), jnp.float32)
    lb = jnp.zeros((n_layers, G), jnp.float32)
    for l, (off_a, off_c, off_w, _) in enumerate(entries):
        pf, pb = lstm[l]["fwd"], lstm[l]["bwd"]
        if l == 0:
            a_blk = scatter(pf["wihT"], "fwd")                                 # x -> fwd gates
            c_blk = scatter(pb["wihT"], "bwd")                                 # x -> bwd gates
        else:
            # step-ordered layer input: hseq[t] = [h_f(t) | h_b(T-1-t)]
            a_blk = jnp.concatenate([scatter(pf["wihT"][:H], "fwd"),
                                     scatter(pb["wihT"][H:], "bwd")], axis=0)  # (2H, 8H)
            c_blk = jnp.concatenate([scatter(pb["wihT"][:H], "bwd"),
                                     scatter(pf["wihT"][H:], "fwd")], axis=0)  # (2H, 8H)
        r_blk = jnp.concatenate([scatter(pf["whhT"], "fwd"),
                                 scatter(pb["whhT"], "bwd")], axis=0)          # (2H, 8H)
        lw = lw.at[off_a:off_a + a_blk.shape[0]].set(a_blk)
        lw = lw.at[off_c:off_c + c_blk.shape[0]].set(c_blk)
        lw = lw.at[off_w:off_w + 2 * H].set(r_blk)
        lb = lb.at[l].set(scatter(pf["b"], "fwd")[0] + scatter(pb["b"], "bwd")[0])
    lw = lw.astype(jnp.bfloat16)

    mlp_dims = tuple((int(wT.shape[0]), int(wT.shape[1])) for wT, _ in mlp)
    mentries, m_rows, lane_w = _mlp_row_layout(mlp_dims)
    mw = jnp.zeros((m_rows, lane_w), jnp.float32)
    for (w_off, b_off, din, dout), (wT, b) in zip(mentries, mlp):
        mw = mw.at[w_off:w_off + din, :dout].set(wT)
        mw = mw.at[b_off:b_off + 1, :dout].set(b)

    return {"lstm_w": lw, "lstm_b": lb, "mlp_w": mw, "mlp_dims": mlp_dims}


# ----------------------------------------------------------------------------
# Wrapper: one grid-less pallas_call, 4 input DMAs total
# ----------------------------------------------------------------------------
def lstm_estimator_forward(x, lstm_w, lstm_bias, mlp_w, *, mlp_dims):
    """x: (B, T, D_in) -> (B, output_dim). Matches PyTorch LSTM_Estimator.forward."""
    B, T, D = x.shape
    n_layers, G = lstm_bias.shape
    H = G // 8
    lstm_entries, _ = _lstm_row_layout(D, H, n_layers)
    mlp_entries, _, _ = _mlp_row_layout(mlp_dims)
    O = mlp_dims[-1][1]
    D_pad = _round_up(D, 8)

    # time-major, flattened: row t*B + b is (time t, batch b); bf16 matmul operand
    x_flat = jnp.transpose(x, (1, 0, 2)).reshape(T * B, D).astype(jnp.bfloat16)
    if D_pad != D:
        x_flat = jnp.pad(x_flat, ((0, 0), (0, D_pad - D)))

    kernel = _make_fused_kernel(n_layers, T, B, H, lstm_entries, mlp_entries,
                                len(mlp_dims))
    return pl.pallas_call(
        kernel,
        out_shape=jax.ShapeDtypeStruct((B, O), jnp.float32),
        in_specs=[_VMEM, _VMEM, _VMEM, _VMEM],
        out_specs=_VMEM,
        scratch_shapes=[pltpu.VMEM((T * B, 2 * H), jnp.bfloat16)],
    )(x_flat, lstm_w, lstm_bias, mlp_w)


# ----------------------------------------------------------------------------
# Pure-JAX references (correctness check only)
# ----------------------------------------------------------------------------
def _lstm_layer_ref(x_tbd, wihT, whhT, b, mm_dtype):
    H = whhT.shape[0]
    B = x_tbd.shape[1]
    wih = wihT.astype(mm_dtype)
    whh = whhT.astype(mm_dtype)

    def step(carry, x_t):
        h, c = carry
        gates = (jnp.dot(x_t.astype(mm_dtype), wih, preferred_element_type=jnp.float32)
                 + jnp.dot(h.astype(mm_dtype), whh, preferred_element_type=jnp.float32)
                 + b)
        i = jax.nn.sigmoid(gates[:, :H])
        f = jax.nn.sigmoid(gates[:, H:2 * H])
        g = jnp.tanh(gates[:, 2 * H:3 * H])
        o = jax.nn.sigmoid(gates[:, 3 * H:])
        c = f * c + i * g
        h = o * jnp.tanh(c)
        return (h, c), h

    init = (jnp.zeros((B, H), jnp.float32), jnp.zeros((B, H), jnp.float32))
    _, hs = jax.lax.scan(step, init, x_tbd)
    return hs


def lstm_estimator_ref(x, params, mm_dtype=jnp.float32):
    inp = jnp.transpose(x, (1, 0, 2)).astype(jnp.float32)
    for layer_p in params["lstm"]:
        pf, pb = layer_p["fwd"], layer_p["bwd"]
        h_fwd = _lstm_layer_ref(inp, pf["wihT"], pf["whhT"], pf["b"], mm_dtype)
        h_bwd = _lstm_layer_ref(inp[::-1], pb["wihT"], pb["whhT"], pb["b"], mm_dtype)[::-1]
        inp = jnp.concatenate([h_fwd, h_bwd], axis=-1)
    act = inp[-1]
    mlp = params["mlp"]
    for i, (wT, b) in enumerate(mlp):
        act = act @ wT + b
        if i < len(mlp) - 1:
            act = jnp.maximum(act, 0.0)
    return act


# ----------------------------------------------------------------------------
# Deterministic parameter init (PyTorch-style uniform(-1/sqrt(fan), 1/sqrt(fan)))
# ----------------------------------------------------------------------------
def init_params(key, input_dim, hidden_dims, output_dim, n_layers, bidirectional=True):
    H = hidden_dims[0]
    ndir = 2 if bidirectional else 1
    bound = 1.0 / sqrt(H)
    params = {"lstm": []}
    for layer in range(n_layers):
        d_in = input_dim if layer == 0 else H * ndir
        layer_p = {}
        for name in (["fwd", "bwd"] if bidirectional else ["fwd"]):
            key, k1, k2, k3, k4 = jax.random.split(key, 5)
            w_ih = jax.random.uniform(k1, (4 * H, d_in), jnp.float32, -bound, bound)
            w_hh = jax.random.uniform(k2, (4 * H, H), jnp.float32, -bound, bound)
            b_ih = jax.random.uniform(k3, (4 * H,), jnp.float32, -bound, bound)
            b_hh = jax.random.uniform(k4, (4 * H,), jnp.float32, -bound, bound)
            layer_p[name] = {
                "wihT": w_ih.T,                        # (d_in, 4H)
                "whhT": w_hh.T,                        # (H, 4H)
                "b": (b_ih + b_hh)[None, :],           # (1, 4H)
            }
        params["lstm"].append(layer_p)

    # MLP: Linear(2H -> hidden_dims[1]) + ReLU + ... + Linear(-> output_dim)
    dims = [H * ndir] + list(hidden_dims[1:]) + [output_dim]
    mlp = []
    for d_in, d_out in zip(dims[:-1], dims[1:]):
        key, k1, k2 = jax.random.split(key, 3)
        bnd = 1.0 / sqrt(d_in)
        wT = jax.random.uniform(k1, (d_out, d_in), jnp.float32, -bnd, bnd).T   # (d_in, d_out)
        b = jax.random.uniform(k2, (d_out,), jnp.float32, -bnd, bnd)[None, :]
        mlp.append((wT, b))
    params["mlp"] = mlp
    return params


# ----------------------------------------------------------------------------
if __name__ == "__main__":
    B, T = 2, 8
    input_dim = 8
    hidden_dims = [32, 48]
    output_dim = 5
    n_layers = 2

    key = jax.random.PRNGKey(0)
    kx, kp = jax.random.split(key)
    x = jax.random.normal(kx, (B, T, input_dim), jnp.float32)     # (batch, seq, input_dim)
    params = init_params(kp, input_dim, hidden_dims, output_dim, n_layers, bidirectional=True)

    packed = pack_params(params, input_dim)                       # one-time weight packing
    fwd = jax.jit(functools.partial(lstm_estimator_forward, mlp_dims=packed["mlp_dims"]))
    out = jax.block_until_ready(
        fwd(x, packed["lstm_w"], packed["lstm_b"], packed["mlp_w"]))

    ref_bf16 = lstm_estimator_ref(x, params, jnp.bfloat16)        # same matmul precision
    ref_f32 = lstm_estimator_ref(x, params, jnp.float32)          # full-precision reference

    assert out.shape == (B, output_dim), out.shape
    assert jnp.allclose(out, ref_bf16, rtol=5e-2, atol=5e-3), (out, ref_bf16)
    assert jnp.allclose(out, ref_f32, rtol=5e-2, atol=5e-2), (out, ref_f32)

    print("KERNEL_OK")
</pallas_src>

<mosaic_0001>
module attributes {stable_mosaic.version = 11 : i64} {
  func.func @kernel(%arg0: memref<16x8xbf16, #tpu.memory_space<vmem>>, %arg1: memref<288x256xbf16, #tpu.memory_space<vmem>>, %arg2: memref<2x256xf32, #tpu.memory_space<vmem>>, %arg3: memref<128x128xf32, #tpu.memory_space<vmem>>, %arg4: memref<2x5xf32, #tpu.memory_space<vmem>>, %arg5: memref<16x64xbf16, #tpu.memory_space<vmem>>) attributes {dimension_semantics = [], scalar_prefetch = 0 : i64, scratch_operands = 1 : i64, tpu.core_type = #tpu.core_type<tc>} {
    %c0 = arith.constant 0 : index
    %c0_0 = arith.constant 0 : index
    %0 = vector.load %arg0[%c0, %c0_0] : memref<16x8xbf16, #tpu.memory_space<vmem>>, vector<16x8xbf16>
    %c0_1 = arith.constant 0 : index
    %c0_2 = arith.constant 0 : index
    %1 = vector.load %arg1[%c0_1, %c0_2] : memref<288x256xbf16, #tpu.memory_space<vmem>>, vector<8x256xbf16>
    %c16 = arith.constant 16 : index
    %c0_3 = arith.constant 0 : index
    %2 = vector.load %arg1[%c16, %c0_3] : memref<288x256xbf16, #tpu.memory_space<vmem>>, vector<8x256xbf16>
    %c32 = arith.constant 32 : index
    %c0_4 = arith.constant 0 : index
    %3 = vector.load %arg1[%c32, %c0_4] : memref<288x256xbf16, #tpu.memory_space<vmem>>, vector<64x256xbf16>
    %c0_5 = arith.constant 0 : index
    %c0_6 = arith.constant 0 : index
    %4 = vector.load %arg2[%c0_5, %c0_6] : memref<2x256xf32, #tpu.memory_space<vmem>>, vector<1x256xf32>
    %cst = arith.constant dense<0.000000e+00> : vector<16x256xf32>
    %5 = tpu.matmul %0, %1, %cst {dimension_numbers = #tpu.dot_dimension_numbers<[1], [0], [0], [1], [0, 0, 1, 1], [], []>} : vector<16x8xbf16>, vector<8x256xbf16>, vector<16x256xf32> -> vector<16x256xf32>
    %cst_7 = arith.constant dense<0.000000e+00> : vector<16x256xf32>
    %6 = tpu.matmul %0, %2, %cst_7 {dimension_numbers = #tpu.dot_dimension_numbers<[1], [0], [0], [1], [0, 0, 1, 1], [], []>} : vector<16x8xbf16>, vector<8x256xbf16>, vector<16x256xf32> -> vector<16x256xf32>
    %7 = vector.extract_strided_slice %5 {offsets = [0, 0], sizes = [2, 256], strides = [1, 1]} : vector<16x256xf32> to vector<2x256xf32>
    %8 = vector.extract_strided_slice %6 {offsets = [14, 0], sizes = [2, 256], strides = [1, 1]} : vector<16x256xf32> to vector<2x256xf32>
    %9 = arith.addf %7, %8 : vector<2x256xf32>
    %10 = vector.broadcast %4 : vector<1x256xf32> to vector<2x256xf32>
    %11 = arith.addf %9, %10 : vector<2x256xf32>
    %12 = vector.extract_strided_slice %5 {offsets = [2, 0], sizes = [2, 256], strides = [1, 1]} : vector<16x256xf32> to vector<2x256xf32>
    %13 = vector.extract_strided_slice %6 {offsets = [12, 0], sizes = [2, 256], strides = [1, 1]} : vector<16x256xf32> to vector<2x256xf32>
    %14 = arith.addf %12, %13 : vector<2x256xf32>
    %15 = vector.broadcast %4 : vector<1x256xf32> to vector<2x256xf32>
    %16 = arith.addf %14, %15 : vector<2x256xf32>
    %17 = vector.extract_strided_slice %5 {offsets = [4, 0], sizes = [2, 256], strides = [1, 1]} : vector<16x256xf32> to vector<2x256xf32>
    %18 = vector.extract_strided_slice %6 {offsets = [10, 0], sizes = [2, 256], strides = [1, 1]} : vector<16x256xf32> to vector<2x256xf32>
    %19 = arith.addf %17, %18 : vector<2x256xf32>
    %20 = vector.broadcast %4 : vector<1x256xf32> to vector<2x256xf32>
    %21 = arith.addf %19, %20 : vector<2x256xf32>
    %22 = vector.extract_strided_slice %5 {offsets = [6, 0], sizes = [2, 256], strides = [1, 1]} : vector<16x256xf32> to vector<2x256xf32>
    %23 = vector.extract_strided_slice %6 {offsets = [8, 0], sizes = [2, 256], strides = [1, 1]} : vector<16x256xf32> to vector<2x256xf32>
    %24 = arith.addf %22, %23 : vector<2x256xf32>
    %25 = vector.broadcast %4 : vector<1x256xf32> to vector<2x256xf32>
    %26 = arith.addf %24, %25 : vector<2x256xf32>
    %27 = vector.extract_strided_slice %5 {offsets = [8, 0], sizes = [2, 256], strides = [1, 1]} : vector<16x256xf32> to vector<2x256xf32>
    %28 = vector.extract_strided_slice %6 {offsets = [6, 0], sizes = [2, 256], strides = [1, 1]} : vector<16x256xf32> to vector<2x256xf32>
    %29 = arith.addf %27, %28 : vector<2x256xf32>
    %30 = vector.broadcast %4 : vector<1x256xf32> to vector<2x256xf32>
    %31 = arith.addf %29, %30 : vector<2x256xf32>
    %32 = vector.extract_strided_slice %5 {offsets = [10, 0], sizes = [2, 256], strides = [1, 1]} : vector<16x256xf32> to vector<2x256xf32>
    %33 = vector.extract_strided_slice %6 {offsets = [4, 0], sizes = [2, 256], strides = [1, 1]} : vector<16x256xf32> to vector<2x256xf32>
    %34 = arith.addf %32, %33 : vector<2x256xf32>
    %35 = vector.broadcast %4 : vector<1x256xf32> to vector<2x256xf32>
    %36 = arith.addf %34, %35 : vector<2x256xf32>
    %37 = vector.extract_strided_slice %5 {offsets = [12, 0], sizes = [2, 256], strides = [1, 1]} : vector<16x256xf32> to vector<2x256xf32>
    %38 = vector.extract_strided_slice %6 {offsets = [2, 0], sizes = [2, 256], strides = [1, 1]} : vector<16x256xf32> to vector<2x256xf32>
    %39 = arith.addf %37, %38 : vector<2x256xf32>
    %40 = vector.broadcast %4 : vector<1x256xf32> to vector<2x256xf32>
    %41 = arith.addf %39, %40 : vector<2x256xf32>
    %42 = vector.extract_strided_slice %5 {offsets = [14, 0], sizes = [2, 256], strides = [1, 1]} : vector<16x256xf32> to vector<2x256xf32>
    %43 = vector.extract_strided_slice %6 {offsets = [0, 0], sizes = [2, 256], strides = [1, 1]} : vector<16x256xf32> to vector<2x256xf32>
    %44 = arith.addf %42, %43 : vector<2x256xf32>
    %45 = vector.broadcast %4 : vector<1x256xf32> to vector<2x256xf32>
    %46 = arith.addf %44, %45 : vector<2x256xf32>
    %cst_8 = arith.constant 0.000000e+00 : f32
    %47 = vector.broadcast %cst_8 : f32 to vector<2x64xf32>
    %48 = vector.extract_strided_slice %11 {offsets = [0, 0], sizes = [2, 64], strides = [1, 1]} : vector<2x256xf32> to vector<2x64xf32>
    %49 = arith.negf %48 : vector<2x64xf32>
    %50 = math.exp %49 : vector<2x64xf32>
    %cst_9 = arith.constant 1.000000e+00 : f32
    %51 = vector.broadcast %cst_9 : f32 to vector<2x64xf32>
    %52 = arith.addf %51, %50 : vector<2x64xf32>
    %53 = arith.divf %51, %52 : vector<2x64xf32>
    %54 = vector.extract_strided_slice %11 {offsets = [0, 64], sizes = [2, 64], strides = [1, 1]} : vector<2x256xf32> to vector<2x64xf32>
    %55 = arith.negf %54 : vector<2x64xf32>
    %56 = math.exp %55 : vector<2x64xf32>
    %cst_10 = arith.constant 1.000000e+00 : f32
    %57 = vector.broadcast %cst_10 : f32 to vector<2x64xf32>
    %58 = arith.addf %57, %56 : vector<2x64xf32>
    %59 = arith.divf %57, %58 : vector<2x64xf32>
    %60 = vector.extract_strided_slice %11 {offsets = [0, 128], sizes = [2, 64], strides = [1, 1]} : vector<2x256xf32> to vector<2x64xf32>
    %61 = math.tanh %60 : vector<2x64xf32>
    %62 = vector.extract_strided_slice %11 {offsets = [0, 192], sizes = [2, 64], strides = [1, 1]} : vector<2x256xf32> to vector<2x64xf32>
    %63 = arith.negf %62 : vector<2x64xf32>
    %64 = math.exp %63 : vector<2x64xf32>
    %cst_11 = arith.constant 1.000000e+00 : f32
    %65 = vector.broadcast %cst_11 : f32 to vector<2x64xf32>
    %66 = arith.addf %65, %64 : vector<2x64xf32>
    %67 = arith.divf %65, %66 : vector<2x64xf32>
    %68 = arith.mulf %59, %47 : vector<2x64xf32>
    %69 = arith.mulf %53, %61 : vector<2x64xf32>
    %70 = arith.addf %68, %69 : vector<2x64xf32>
    %71 = math.tanh %70 : vector<2x64xf32>
    %72 = arith.mulf %67, %71 : vector<2x64xf32>
    %73 = arith.truncf %72 : vector<2x64xf32> to vector<2x64xbf16>
    %c0_12 = arith.constant 0 : index
    %c0_13 = arith.constant 0 : index
    %74 = vector.load %arg5[%c0_12, %c0_13] : memref<16x64xbf16, #tpu.memory_space<vmem>>, vector<2x64xbf16>
    tpu.vector_store %arg5[%c0_12, %c0_13], %73 {strides = array<i32>} : memref<16x64xbf16, #tpu.memory_space<vmem>>, vector<2x64xbf16>,
    %cst_14 = arith.constant dense<0.000000e+00> : vector<2x256xf32>
    %75 = tpu.matmul %73, %3, %cst_14 {dimension_numbers = #tpu.dot_dimension_numbers<[1], [0], [0], [1], [0, 0, 1, 1], [], []>} : vector<2x64xbf16>, vector<64x256xbf16>, vector<2x256xf32> -> vector<2x256xf32>
    %76 = arith.addf %16, %75 : vector<2x256xf32>
    %77 = vector.extract_strided_slice %76 {offsets = [0, 0], sizes = [2, 64], strides = [1, 1]} : vector<2x256xf32> to vector<2x64xf32>
    %78 = arith.negf %77 : vector<2x64xf32>
    %79 = math.exp %78 : vector<2x64xf32>
    %cst_15 = arith.constant 1.000000e+00 : f32
    %80 = vector.broadcast %cst_15 : f32 to vector<2x64xf32>
    %81 = arith.addf %80, %79 : vector<2x64xf32>
    %82 = arith.divf %80, %81 : vector<2x64xf32>
    %83 = vector.extract_strided_slice %76 {offsets = [0, 64], sizes = [2, 64], strides = [1, 1]} : vector<2x256xf32> to vector<2x64xf32>
    %84 = arith.negf %83 : vector<2x64xf32>
    %85 = math.exp %84 : vector<2x64xf32>
    %cst_16 = arith.constant 1.000000e+00 : f32
    %86 = vector.broadcast %cst_16 : f32 to vector<2x64xf32>
    %87 = arith.addf %86, %85 : vector<2x64xf32>
    %88 = arith.divf %86, %87 : vector<2x64xf32>
    %89 = vector.extract_strided_slice %76 {offsets = [0, 128], sizes = [2, 64], strides = [1, 1]} : vector<2x256xf32> to vector<2x64xf32>
    %90 = math.tanh %89 : vector<2x64xf32>
    %91 = vector.extract_strided_slice %76 {offsets = [0, 192], sizes = [2, 64], strides = [1, 1]} : vector<2x256xf32> to vector<2x64xf32>
    %92 = arith.negf %91 : vector<2x64xf32>
    %93 = math.exp %92 : vector<2x64xf32>
    %cst_17 = arith.constant 1.000000e+00 : f32
    %94 = vector.broadcast %cst_17 : f32 to vector<2x64xf32>
    %95 = arith.addf %94, %93 : vector<2x64xf32>
    %96 = arith.divf %94, %95 : vector<2x64xf32>
    %97 = arith.mulf %88, %70 : vector<2x64xf32>
    %98 = arith.mulf %82, %90 : vector<2x64xf32>
    %99 = arith.addf %97, %98 : vector<2x64xf32>
    %100 = math.tanh %99 : vector<2x64xf32>
    %101 = arith.mulf %96, %100 : vector<2x64xf32>
    %102 = arith.truncf %101 : vector<2x64xf32> to vector<2x64xbf16>
    %c2 = arith.constant 2 : index
    %c0_18 = arith.constant 0 : index
    %103 = vector.load %arg5[%c2, %c0_18] : memref<16x64xbf16, #tpu.memory_space<vmem>>, vector<2x64xbf16>
    tpu.vector_store %arg5[%c2, %c0_18], %102 {strides = array<i32>} : memref<16x64xbf16, #tpu.memory_space<vmem>>, vector<2x64xbf16>,
    %cst_19 = arith.constant dense<0.000000e+00> : vector<2x256xf32>
    %104 = tpu.matmul %102, %3, %cst_19 {dimension_numbers = #tpu.dot_dimension_numbers<[1], [0], [0], [1], [0, 0, 1, 1], [], []>} : vector<2x64xbf16>, vector<64x256xbf16>, vector<2x256xf32> -> vector<2x256xf32>
    %105 = arith.addf %21, %104 : vector<2x256xf32>
    %106 = vector.extract_strided_slice %105 {offsets = [0, 0], sizes = [2, 64], strides = [1, 1]} : vector<2x256xf32> to vector<2x64xf32>
    %107 = arith.negf %106 : vector<2x64xf32>
    %108 = math.exp %107 : vector<2x64xf32>
    %cst_20 = arith.constant 1.000000e+00 : f32
    %109 = vector.broadcast %cst_20 : f32 to vector<2x64xf32>
    %110 = arith.addf %109, %108 : vector<2x64xf32>
    %111 = arith.divf %109, %110 : vector<2x64xf32>
    %112 = vector.extract_strided_slice %105 {offsets = [0, 64], sizes = [2, 64], strides = [1, 1]} : vector<2x256xf32> to vector<2x64xf32>
    %113 = arith.negf %112 : vector<2x64xf32>
    %114 = math.exp %113 : vector<2x64xf32>
    %cst_21 = arith.constant 1.000000e+00 : f32
    %115 = vector.broadcast %cst_21 : f32 to vector<2x64xf32>
    %116 = arith.addf %115, %114 : vector<2x64xf32>
    %117 = arith.divf %115, %116 : vector<2x64xf32>
    %118 = vector.extract_strided_slice %105 {offsets = [0, 128], sizes = [2, 64], strides = [1, 1]} : vector<2x256xf32> to vector<2x64xf32>
    %119 = math.tanh %118 : vector<2x64xf32>
    %120 = vector.extract_strided_slice %105 {offsets = [0, 192], sizes = [2, 64], strides = [1, 1]} : vector<2x256xf32> to vector<2x64xf32>
    %121 = arith.negf %120 : vector<2x64xf32>
    %122 = math.exp %121 : vector<2x64xf32>
    %cst_22 = arith.constant 1.000000e+00 : f32
    %123 = vector.broadcast %cst_22 : f32 to vector<2x64xf32>
    %124 = arith.addf %123, %122 : vector<2x64xf32>
    %125 = arith.divf %123, %124 : vector<2x64xf32>
    %126 = arith.mulf %117, %99 : vector<2x64xf32>
    %127 = arith.mulf %111, %119 : vector<2x64xf32>
    %128 = arith.addf %126, %127 : vector<2x64xf32>
    %129 = math.tanh %128 : vector<2x64xf32>
    %130 = arith.mulf %125, %129 : vector<2x64xf32>
    %131 = arith.truncf %130 : vector<2x64xf32> to vector<2x64xbf16>
    %c4 = arith.constant 4 : index
    %c0_23 = arith.constant 0 : index
    %132 = vector.load %arg5[%c4, %c0_23] : memref<16x64xbf16, #tpu.memory_space<vmem>>, vector<2x64xbf16>
    tpu.vector_store %arg5[%c4, %c0_23], %131 {strides = array<i32>} : memref<16x64xbf16, #tpu.memory_space<vmem>>, vector<2x64xbf16>,
    %cst_24 = arith.constant dense<0.000000e+00> : vector<2x256xf32>
    %133 = tpu.matmul %131, %3, %cst_24 {dimension_numbers = #tpu.dot_dimension_numbers<[1], [0], [0], [1], [0, 0, 1, 1], [], []>} : vector<2x64xbf16>, vector<64x256xbf16>, vector<2x256xf32> -> vector<2x256xf32>
    %134 = arith.addf %26, %133 : vector<2x256xf32>
    %135 = vector.extract_strided_slice %134 {offsets = [0, 0], sizes = [2, 64], strides = [1, 1]} : vector<2x256xf32> to vector<2x64xf32>
    %136 = arith.negf %135 : vector<2x64xf32>
    %137 = math.exp %136 : vector<2x64xf32>
    %cst_25 = arith.constant 1.000000e+00 : f32
    %138 = vector.broadcast %cst_25 : f32 to vector<2x64xf32>
    %139 = arith.addf %138, %137 : vector<2x64xf32>
    %140 = arith.divf %138, %139 : vector<2x64xf32>
    %141 = vector.extract_strided_slice %134 {offsets = [0, 64], sizes = [2, 64], strides = [1, 1]} : vector<2x256xf32> to vector<2x64xf32>
    %142 = arith.negf %141 : vector<2x64xf32>
    %143 = math.exp %142 : vector<2x64xf32>
    %cst_26 = arith.constant 1.000000e+00 : f32
    %144 = vector.broadcast %cst_26 : f32 to vector<2x64xf32>
    %145 = arith.addf %144, %143 : vector<2x64xf32>
    %146 = arith.divf %144, %145 : vector<2x64xf32>
    %147 = vector.extract_strided_slice %134 {offsets = [0, 128], sizes = [2, 64], strides = [1, 1]} : vector<2x256xf32> to vector<2x64xf32>
    %148 = math.tanh %147 : vector<2x64xf32>
    %149 = vector.extract_strided_slice %134 {offsets = [0, 192], sizes = [2, 64], strides = [1, 1]} : vector<2x256xf32> to vector<2x64xf32>
    %150 = arith.negf %149 : vector<2x64xf32>
    %151 = math.exp %150 : vector<2x64xf32>
    %cst_27 = arith.constant 1.000000e+00 : f32
    %152 = vector.broadcast %cst_27 : f32 to vector<2x64xf32>
    %153 = arith.addf %152, %151 : vector<2x64xf32>
    %154 = arith.divf %152, %153 : vector<2x64xf32>
    %155 = arith.mulf %146, %128 : vector<2x64xf32>
    %156 = arith.mulf %140, %148 : vector<2x64xf32>
    %157 = arith.addf %155, %156 : vector<2x64xf32>
    %158 = math.tanh %157 : vector<2x64xf32>
    %159 = arith.mulf %154, %158 : vector<2x64xf32>
    %160 = arith.truncf %159 : vector<2x64xf32> to vector<2x64xbf16>
    %c6 = arith.constant 6 : index
    %c0_28 = arith.constant 0 : index
    %161 = vector.load %arg5[%c6, %c0_28] : memref<16x64xbf16, #tpu.memory_space<vmem>>, vector<2x64xbf16>
    tpu.vector_store %arg5[%c6, %c0_28], %160 {strides = array<i32>} : memref<16x64xbf16, #tpu.memory_space<vmem>>, vector<2x64xbf16>,
    %cst_29 = arith.constant dense<0.000000e+00> : vector<2x256xf32>
    %162 = tpu.matmul %160, %3, %cst_29 {dimension_numbers = #tpu.dot_dimension_numbers<[1], [0], [0], [1], [0, 0, 1, 1], [], []>} : vector<2x64xbf16>, vector<64x256xbf16>, vector<2x256xf32> -> vector<2x256xf32>
    %163 = arith.addf %31, %162 : vector<2x256xf32>
    %164 = vector.extract_strided_slice %163 {offsets = [0, 0], sizes = [2, 64], strides = [1, 1]} : vector<2x256xf32> to vector<2x64xf32>
    %165 = arith.negf %164 : vector<2x64xf32>
    %166 = math.exp %165 : vector<2x64xf32>
    %cst_30 = arith.constant 1.000000e+00 : f32
    %167 = vector.broadcast %cst_30 : f32 to vector<2x64xf32>
    %168 = arith.addf %167, %166 : vector<2x64xf32>
    %169 = arith.divf %167, %168 : vector<2x64xf32>
    %170 = vector.extract_strided_slice %163 {offsets = [0, 64], sizes = [2, 64], strides = [1, 1]} : vector<2x256xf32> to vector<2x64xf32>
    %171 = arith.negf %170 : vector<2x64xf32>
    %172 = math.exp %171 : vector<2x64xf32>
    %cst_31 = arith.constant 1.000000e+00 : f32
    %173 = vector.broadcast %cst_31 : f32 to vector<2x64xf32>
    %174 = arith.addf %173, %172 : vector<2x64xf32>
    %175 = arith.divf %173, %174 : vector<2x64xf32>
    %176 = vector.extract_strided_slice %163 {offsets = [0, 128], sizes = [2, 64], strides = [1, 1]} : vector<2x256xf32> to vector<2x64xf32>
    %177 = math.tanh %176 : vector<2x64xf32>
    %178 = vector.extract_strided_slice %163 {offsets = [0, 192], sizes = [2, 64], strides = [1, 1]} : vector<2x256xf32> to vector<2x64xf32>
    %179 = arith.negf %178 : vector<2x64xf32>
    %180 = math.exp %179 : vector<2x64xf32>
    %cst_32 = arith.constant 1.000000e+00 : f32
    %181 = vector.broadcast %cst_32 : f32 to vector<2x64xf32>
    %182 = arith.addf %181, %180 : vector<2x64xf32>
    %183 = arith.divf %181, %182 : vector<2x64xf32>
    %184 = arith.mulf %175, %157 : vector<2x64xf32>
    %185 = arith.mulf %169, %177 : vector<2x64xf32>
    %186 = arith.addf %184, %185 : vector<2x64xf32>
    %187 = math.tanh %186 : vector<2x64xf32>
    %188 = arith.mulf %183, %187 : vector<2x64xf32>
    %189 = arith.truncf %188 : vector<2x64xf32> to vector<2x64xbf16>
    %c8 = arith.constant 8 : index
    %c0_33 = arith.constant 0 : index
    %190 = vector.load %arg5[%c8, %c0_33] : memref<16x64xbf16, #tpu.memory_space<vmem>>, vector<2x64xbf16>
    tpu.vector_store %arg5[%c8, %c0_33], %189 {strides = array<i32>} : memref<16x64xbf16, #tpu.memory_space<vmem>>, vector<2x64xbf16>,
    %cst_34 = arith.constant dense<0.000000e+00> : vector<2x256xf32>
    %191 = tpu.matmul %189, %3, %cst_34 {dimension_numbers = #tpu.dot_dimension_numbers<[1], [0], [0], [1], [0, 0, 1, 1], [], []>} : vector<2x64xbf16>, vector<64x256xbf16>, vector<2x256xf32> -> vector<2x256xf32>
    %192 = arith.addf %36, %191 : vector<2x256xf32>
    %193 = vector.extract_strided_slice %192 {offsets = [0, 0], sizes = [2, 64], strides = [1, 1]} : vector<2x256xf32> to vector<2x64xf32>
    %194 = arith.negf %193 : vector<2x64xf32>
    %195 = math.exp %194 : vector<2x64xf32>
    %cst_35 = arith.constant 1.000000e+00 : f32
    %196 = vector.broadcast %cst_35 : f32 to vector<2x64xf32>
    %197 = arith.addf %196, %195 : vector<2x64xf32>
    %198 = arith.divf %196, %197 : vector<2x64xf32>
    %199 = vector.extract_strided_slice %192 {offsets = [0, 64], sizes = [2, 64], strides = [1, 1]} : vector<2x256xf32> to vector<2x64xf32>
    %200 = arith.negf %199 : vector<2x64xf32>
    %201 = math.exp %200 : vector<2x64xf32>
    %cst_36 = arith.constant 1.000000e+00 : f32
    %202 = vector.broadcast %cst_36 : f32 to vector<2x64xf32>
    %203 = arith.addf %202, %201 : vector<2x64xf32>
    %204 = arith.divf %202, %203 : vector<2x64xf32>
    %205 = vector.extract_strided_slice %192 {offsets = [0, 128], sizes = [2, 64], strides = [1, 1]} : vector<2x256xf32> to vector<2x64xf32>
    %206 = math.tanh %205 : vector<2x64xf32>
    %207 = vector.extract_strided_slice %192 {offsets = [0, 192], sizes = [2, 64], strides = [1, 1]} : vector<2x256xf32> to vector<2x64xf32>
    %208 = arith.negf %207 : vector<2x64xf32>
    %209 = math.exp %208 : vector<2x64xf32>
    %cst_37 = arith.constant 1.000000e+00 : f32
    %210 = vector.broadcast %cst_37 : f32 to vector<2x64xf32>
    %211 = arith.addf %210, %209 : vector<2x64xf32>
    %212 = arith.divf %210, %211 : vector<2x64xf32>
    %213 = arith.mulf %204, %186 : vector<2x64xf32>
    %214 = arith.mulf %198, %206 : vector<2x64xf32>
    %215 = arith.addf %213, %214 : vector<2x64xf32>
    %216 = math.tanh %215 : vector<2x64xf32>
    %217 = arith.mulf %212, %216 : vector<2x64xf32>
    %218 = arith.truncf %217 : vector<2x64xf32> to vector<2x64xbf16>
    %c10 = arith.constant 10 : index
    %c0_38 = arith.constant 0 : index
    %219 = vector.load %arg5[%c10, %c0_38] : memref<16x64xbf16, #tpu.memory_space<vmem>>, vector<2x64xbf16>
    tpu.vector_store %arg5[%c10, %c0_38], %218 {strides = array<i32>} : memref<16x64xbf16, #tpu.memory_space<vmem>>, vector<2x64xbf16>,
    %cst_39 = arith.constant dense<0.000000e+00> : vector<2x256xf32>
    %220 = tpu.matmul %218, %3, %cst_39 {dimension_numbers = #tpu.dot_dimension_numbers<[1], [0], [0], [1], [0, 0, 1, 1], [], []>} : vector<2x64xbf16>, vector<64x256xbf16>, vector<2x256xf32> -> vector<2x256xf32>
    %221 = arith.addf %41, %220 : vector<2x256xf32>
    %222 = vector.extract_strided_slice %221 {offsets = [0, 0], sizes = [2, 64], strides = [1, 1]} : vector<2x256xf32> to vector<2x64xf32>
    %223 = arith.negf %222 : vector<2x64xf32>
    %224 = math.exp %223 : vector<2x64xf32>
    %cst_40 = arith.constant 1.000000e+00 : f32
    %225 = vector.broadcast %cst_40 : f32 to vector<2x64xf32>
    %226 = arith.addf %225, %224 : vector<2x64xf32>
    %227 = arith.divf %225, %226 : vector<2x64xf32>
    %228 = vector.extract_strided_slice %221 {offsets = [0, 64], sizes = [2, 64], strides = [1, 1]} : vector<2x256xf32> to vector<2x64xf32>
    %229 = arith.negf %228 : vector<2x64xf32>
    %230 = math.exp %229 : vector<2x64xf32>
    %cst_41 = arith.constant 1.000000e+00 : f32
    %231 = vector.broadcast %cst_41 : f32 to vector<2x64xf32>
    %232 = arith.addf %231, %230 : vector<2x64xf32>
    %233 = arith.divf %231, %232 : vector<2x64xf32>
    %234 = vector.extract_strided_slice %221 {offsets = [0, 128], sizes = [2, 64], strides = [1, 1]} : vector<2x256xf32> to vector<2x64xf32>
    %235 = math.tanh %234 : vector<2x64xf32>
    %236 = vector.extract_strided_slice %221 {offsets = [0, 192], sizes = [2, 64], strides = [1, 1]} : vector<2x256xf32> to vector<2x64xf32>
    %237 = arith.negf %236 : vector<2x64xf32>
    %238 = math.exp %237 : vector<2x64xf32>
    %cst_42 = arith.constant 1.000000e+00 : f32
    %239 = vector.broadcast %cst_42 : f32 to vector<2x64xf32>
    %240 = arith.addf %239, %238 : vector<2x64xf32>
    %241 = arith.divf %239, %240 : vector<2x64xf32>
    %242 = arith.mulf %233, %215 : vector<2x64xf32>
    %243 = arith.mulf %227, %235 : vector<2x64xf32>
    %244 = arith.addf %242, %243 : vector<2x64xf32>
    %245 = math.tanh %244 : vector<2x64xf32>
    %246 = arith.mulf %241, %245 : vector<2x64xf32>
    %247 = arith.truncf %246 : vector<2x64xf32> to vector<2x64xbf16>
    %c12 = arith.constant 12 : index
    %c0_43 = arith.constant 0 : index
    %248 = vector.load %arg5[%c12, %c0_43] : memref<16x64xbf16, #tpu.memory_space<vmem>>, vector<2x64xbf16>
    tpu.vector_store %arg5[%c12, %c0_43], %247 {strides = array<i32>} : memref<16x64xbf16, #tpu.memory_space<vmem>>, vector<2x64xbf16>,
    %cst_44 = arith.constant dense<0.000000e+00> : vector<2x256xf32>
    %249 = tpu.matmul %247, %3, %cst_44 {dimension_numbers = #tpu.dot_dimension_numbers<[1], [0], [0], [1], [0, 0, 1, 1], [], []>} : vector<2x64xbf16>, vector<64x256xbf16>, vector<2x256xf32> -> vector<2x256xf32>
    %250 = arith.addf %46, %249 : vector<2x256xf32>
    %251 = vector.extract_strided_slice %250 {offsets = [0, 0], sizes = [2, 64], strides = [1, 1]} : vector<2x256xf32> to vector<2x64xf32>
    %252 = arith.negf %251 : vector<2x64xf32>
    %253 = math.exp %252 : vector<2x64xf32>
    %cst_45 = arith.constant 1.000000e+00 : f32
    %254 = vector.broadcast %cst_45 : f32 to vector<2x64xf32>
    %255 = arith.addf %254, %253 : vector<2x64xf32>
    %256 = arith.divf %254, %255 : vector<2x64xf32>
    %257 = vector.extract_strided_slice %250 {offsets = [0, 64], sizes = [2, 64], strides = [1, 1]} : vector<2x256xf32> to vector<2x64xf32>
    %258 = arith.negf %257 : vector<2x64xf32>
    %259 = math.exp %258 : vector<2x64xf32>
    %cst_46 = arith.constant 1.000000e+00 : f32
    %260 = vector.broadcast %cst_46 : f32 to vector<2x64xf32>
    %261 = arith.addf %260, %259 : vector<2x64xf32>
    %262 = arith.divf %260, %261 : vector<2x64xf32>
    %263 = vector.extract_strided_slice %250 {offsets = [0, 128], sizes = [2, 64], strides = [1, 1]} : vector<2x256xf32> to vector<2x64xf32>
    %264 = math.tanh %263 : vector<2x64xf32>
    %265 = vector.extract_strided_slice %250 {offsets = [0, 192], sizes = [2, 64], strides = [1, 1]} : vector<2x256xf32> to vector<2x64xf32>
    %266 = arith.negf %265 : vector<2x64xf32>
    %267 = math.exp %266 : vector<2x64xf32>
    %cst_47 = arith.constant 1.000000e+00 : f32
    %268 = vector.broadcast %cst_47 : f32 to vector<2x64xf32>
    %269 = arith.addf %268, %267 : vector<2x64xf32>
    %270 = arith.divf %268, %269 : vector<2x64xf32>
    %271 = arith.mulf %262, %244 : vector<2x64xf32>
    %272 = arith.mulf %256, %264 : vector<2x64xf32>
    %273 = arith.addf %271, %272 : vector<2x64xf32>
    %274 = math.tanh %273 : vector<2x64xf32>
    %275 = arith.mulf %270, %274 : vector<2x64xf32>
    %276 = arith.truncf %275 : vector<2x64xf32> to vector<2x64xbf16>
    %c14 = arith.constant 14 : index
    %c0_48 = arith.constant 0 : index
    %277 = vector.load %arg5[%c14, %c0_48] : memref<16x64xbf16, #tpu.memory_space<vmem>>, vector<2x64xbf16>
    tpu.vector_store %arg5[%c14, %c0_48], %276 {strides = array<i32>} : memref<16x64xbf16, #tpu.memory_space<vmem>>, vector<2x64xbf16>,
    %c0_49 = arith.constant 0 : index
    %c0_50 = arith.constant 0 : index
    %278 = vector.load %arg5[%c0_49, %c0_50] : memref<16x64xbf16, #tpu.memory_space<vmem>>, vector<16x64xbf16>
    %c96 = arith.constant 96 : index
    %c0_51 = arith.constant 0 : index
    %279 = vector.load %arg1[%c96, %c0_51] : memref<288x256xbf16, #tpu.memory_space<vmem>>, vector<64x256xbf16>
    %c160 = arith.constant 160 : index
    %c0_52 = arith.constant 0 : index
    %280 = vector.load %arg1[%c160, %c0_52] : memref<288x256xbf16, #tpu.memory_space<vmem>>, vector<64x256xbf16>
    %c224 = arith.constant 224 : index
    %c0_53 = arith.constant 0 : index
    %281 = vector.load %arg1[%c224, %c0_53] : memref<288x256xbf16, #tpu.memory_space<vmem>>, vector<64x256xbf16>
    %c1 = arith.constant 1 : index
    %c0_54 = arith.constant 0 : index
    %282 = vector.load %arg2[%c1, %c0_54] : memref<2x256xf32, #tpu.memory_space<vmem>>, vector<1x256xf32>
    %cst_55 = arith.constant dense<0.000000e+00> : vector<16x256xf32>
    %283 = tpu.matmul %278, %279, %cst_55 {dimension_numbers = #tpu.dot_dimension_numbers<[1], [0], [0], [1], [0, 0, 1, 1], [], []>} : vector<16x64xbf16>, vector<64x256xbf16>, vector<16x256xf32> -> vector<16x256xf32>
    %cst_56 = arith.constant dense<0.000000e+00> : vector<16x256xf32>
    %284 = tpu.matmul %278, %280, %cst_56 {dimension_numbers = #tpu.dot_dimension_numbers<[1], [0], [0], [1], [0, 0, 1, 1], [], []>} : vector<16x64xbf16>, vector<64x256xbf16>, vector<16x256xf32> -> vector<16x256xf32>
    %285 = vector.extract_strided_slice %283 {offsets = [0, 0], sizes = [2, 256], strides = [1, 1]} : vector<16x256xf32> to vector<2x256xf32>
    %286 = vector.extract_strided_slice %284 {offsets = [14, 0], sizes = [2, 256], strides = [1, 1]} : vector<16x256xf32> to vector<2x256xf32>
    %287 = arith.addf %285, %286 : vector<2x256xf32>
    %288 = vector.broadcast %282 : vector<1x256xf32> to vector<2x256xf32>
    %289 = arith.addf %287, %288 : vector<2x256xf32>
    %290 = vector.extract_strided_slice %283 {offsets = [2, 0], sizes = [2, 256], strides = [1, 1]} : vector<16x256xf32> to vector<2x256xf32>
    %291 = vector.extract_strided_slice %284 {offsets = [12, 0], sizes = [2, 256], strides = [1, 1]} : vector<16x256xf32> to vector<2x256xf32>
    %292 = arith.addf %290, %291 : vector<2x256xf32>
    %293 = vector.broadcast %282 : vector<1x256xf32> to vector<2x256xf32>
    %294 = arith.addf %292, %293 : vector<2x256xf32>
    %295 = vector.extract_strided_slice %283 {offsets = [4, 0], sizes = [2, 256], strides = [1, 1]} : vector<16x256xf32> to vector<2x256xf32>
    %296 = vector.extract_strided_slice %284 {offsets = [10, 0], sizes = [2, 256], strides = [1, 1]} : vector<16x256xf32> to vector<2x256xf32>
    %297 = arith.addf %295, %296 : vector<2x256xf32>
    %298 = vector.broadcast %282 : vector<1x256xf32> to vector<2x256xf32>
    %299 = arith.addf %297, %298 : vector<2x256xf32>
    %300 = vector.extract_strided_slice %283 {offsets = [6, 0], sizes = [2, 256], strides = [1, 1]} : vector<16x256xf32> to vector<2x256xf32>
    %301 = vector.extract_strided_slice %284 {offsets = [8, 0], sizes = [2, 256], strides = [1, 1]} : vector<16x256xf32> to vector<2x256xf32>
    %302 = arith.addf %300, %301 : vector<2x256xf32>
    %303 = vector.broadcast %282 : vector<1x256xf32> to vector<2x256xf32>
    %304 = arith.addf %302, %303 : vector<2x256xf32>
    %305 = vector.extract_strided_slice %283 {offsets = [8, 0], sizes = [2, 256], strides = [1, 1]} : vector<16x256xf32> to vector<2x256xf32>
    %306 = vector.extract_strided_slice %284 {offsets = [6, 0], sizes = [2, 256], strides = [1, 1]} : vector<16x256xf32> to vector<2x256xf32>
    %307 = arith.addf %305, %306 : vector<2x256xf32>
    %308 = vector.broadcast %282 : vector<1x256xf32> to vector<2x256xf32>
    %309 = arith.addf %307, %308 : vector<2x256xf32>
    %310 = vector.extract_strided_slice %283 {offsets = [10, 0], sizes = [2, 256], strides = [1, 1]} : vector<16x256xf32> to vector<2x256xf32>
    %311 = vector.extract_strided_slice %284 {offsets = [4, 0], sizes = [2, 256], strides = [1, 1]} : vector<16x256xf32> to vector<2x256xf32>
    %312 = arith.addf %310, %311 : vector<2x256xf32>
    %313 = vector.broadcast %282 : vector<1x256xf32> to vector<2x256xf32>
    %314 = arith.addf %312, %313 : vector<2x256xf32>
    %315 = vector.extract_strided_slice %283 {offsets = [12, 0], sizes = [2, 256], strides = [1, 1]} : vector<16x256xf32> to vector<2x256xf32>
    %316 = vector.extract_strided_slice %284 {offsets = [2, 0], sizes = [2, 256], strides = [1, 1]} : vector<16x256xf32> to vector<2x256xf32>
    %317 = arith.addf %315, %316 : vector<2x256xf32>
    %318 = vector.broadcast %282 : vector<1x256xf32> to vector<2x256xf32>
    %319 = arith.addf %317, %318 : vector<2x256xf32>
    %320 = vector.extract_strided_slice %283 {offsets = [14, 0], sizes = [2, 256], strides = [1, 1]} : vector<16x256xf32> to vector<2x256xf32>
    %321 = vector.extract_strided_slice %284 {offsets = [0, 0], sizes = [2, 256], strides = [1, 1]} : vector<16x256xf32> to vector<2x256xf32>
    %322 = arith.addf %320, %321 : vector<2x256xf32>
    %323 = vector.broadcast %282 : vector<1x256xf32> to vector<2x256xf32>
    %324 = arith.addf %322, %323 : vector<2x256xf32>
    %cst_57 = arith.constant 0.000000e+00 : f32
    %325 = vector.broadcast %cst_57 : f32 to vector<2x64xf32>
    %326 = vector.extract_strided_slice %289 {offsets = [0, 0], sizes = [2, 64], strides = [1, 1]} : vector<2x256xf32> to vector<2x64xf32>
    %327 = arith.negf %326 : vector<2x64xf32>
    %328 = math.exp %327 : vector<2x64xf32>
    %cst_58 = arith.constant 1.000000e+00 : f32
    %329 = vector.broadcast %cst_58 : f32 to vector<2x64xf32>
    %330 = arith.addf %329, %328 : vector<2x64xf32>
    %331 = arith.divf %329, %330 : vector<2x64xf32>
    %332 = vector.extract_strided_slice %289 {offsets = [0, 64], sizes = [2, 64], strides = [1, 1]} : vector<2x256xf32> to vector<2x64xf32>
    %333 = arith.negf %332 : vector<2x64xf32>
    %334 = math.exp %333 : vector<2x64xf32>
    %cst_59 = arith.constant 1.000000e+00 : f32
    %335 = vector.broadcast %cst_59 : f32 to vector<2x64xf32>
    %336 = arith.addf %335, %334 : vector<2x64xf32>
    %337 = arith.divf %335, %336 : vector<2x64xf32>
    %338 = vector.extract_strided_slice %289 {offsets = [0, 128], sizes = [2, 64], strides = [1, 1]} : vector<2x256xf32> to vector<2x64xf32>
    %339 = math.tanh %338 : vector<2x64xf32>
    %340 = vector.extract_strided_slice %289 {offsets = [0, 192], sizes = [2, 64], strides = [1, 1]} : vector<2x256xf32> to vector<2x64xf32>
    %341 = arith.negf %340 : vector<2x64xf32>
    %342 = math.exp %341 : vector<2x64xf32>
    %cst_60 = arith.constant 1.000000e+00 : f32
    %343 = vector.broadcast %cst_60 : f32 to vector<2x64xf32>
    %344 = arith.addf %343, %342 : vector<2x64xf32>
    %345 = arith.divf %343, %344 : vector<2x64xf32>
    %346 = arith.mulf %337, %325 : vector<2x64xf32>
    %347 = arith.mulf %331, %339 : vector<2x64xf32>
    %348 = arith.addf %346, %347 : vector<2x64xf32>
    %349 = math.tanh %348 : vector<2x64xf32>
    %350 = arith.mulf %345, %349 : vector<2x64xf32>
    %351 = arith.truncf %350 : vector<2x64xf32> to vector<2x64xbf16>
    %352 = vector.extract_strided_slice %350 {offsets = [0, 32], sizes = [2, 32], strides = [1, 1]} : vector<2x64xf32> to vector<2x32xf32>
    %cst_61 = arith.constant dense<0.000000e+00> : vector<2x256xf32>
    %353 = tpu.matmul %351, %281, %cst_61 {dimension_numbers = #tpu.dot_dimension_numbers<[1], [0], [0], [1], [0, 0, 1, 1], [], []>} : vector<2x64xbf16>, vector<64x256xbf16>, vector<2x256xf32> -> vector<2x256xf32>
    %354 = arith.addf %294, %353 : vector<2x256xf32>
    %355 = vector.extract_strided_slice %354 {offsets = [0, 0], sizes = [2, 64], strides = [1, 1]} : vector<2x256xf32> to vector<2x64xf32>
    %356 = arith.negf %355 : vector<2x64xf32>
    %357 = math.exp %356 : vector<2x64xf32>
    %cst_62 = arith.constant 1.000000e+00 : f32
    %358 = vector.broadcast %cst_62 : f32 to vector<2x64xf32>
    %359 = arith.addf %358, %357 : vector<2x64xf32>
    %360 = arith.divf %358, %359 : vector<2x64xf32>
    %361 = vector.extract_strided_slice %354 {offsets = [0, 64], sizes = [2, 64], strides = [1, 1]} : vector<2x256xf32> to vector<2x64xf32>
    %362 = arith.negf %361 : vector<2x64xf32>
    %363 = math.exp %362 : vector<2x64xf32>
    %cst_63 = arith.constant 1.000000e+00 : f32
    %364 = vector.broadcast %cst_63 : f32 to vector<2x64xf32>
    %365 = arith.addf %364, %363 : vector<2x64xf32>
    %366 = arith.divf %364, %365 : vector<2x64xf32>
    %367 = vector.extract_strided_slice %354 {offsets = [0, 128], sizes = [2, 64], strides = [1, 1]} : vector<2x256xf32> to vector<2x64xf32>
    %368 = math.tanh %367 : vector<2x64xf32>
    %369 = vector.extract_strided_slice %354 {offsets = [0, 192], sizes = [2, 64], strides = [1, 1]} : vector<2x256xf32> to vector<2x64xf32>
    %370 = arith.negf %369 : vector<2x64xf32>
    %371 = math.exp %370 : vector<2x64xf32>
    %cst_64 = arith.constant 1.000000e+00 : f32
    %372 = vector.broadcast %cst_64 : f32 to vector<2x64xf32>
    %373 = arith.addf %372, %371 : vector<2x64xf32>
    %374 = arith.divf %372, %373 : vector<2x64xf32>
    %375 = arith.mulf %366, %348 : vector<2x64xf32>
    %376 = arith.mulf %360, %368 : vector<2x64xf32>
    %377 = arith.addf %375, %376 : vector<2x64xf32>
    %378 = math.tanh %377 : vector<2x64xf32>
    %379 = arith.mulf %374, %378 : vector<2x64xf32>
    %380 = arith.truncf %379 : vector<2x64xf32> to vector<2x64xbf16>
    %cst_65 = arith.constant dense<0.000000e+00> : vector<2x256xf32>
    %381 = tpu.matmul %380, %281, %cst_65 {dimension_numbers = #tpu.dot_dimension_numbers<[1], [0], [0], [1], [0, 0, 1, 1], [], []>} : vector<2x64xbf16>, vector<64x256xbf16>, vector<2x256xf32> -> vector<2x256xf32>
    %382 = arith.addf %299, %381 : vector<2x256xf32>
    %383 = vector.extract_strided_slice %382 {offsets = [0, 0], sizes = [2, 64], strides = [1, 1]} : vector<2x256xf32> to vector<2x64xf32>
    %384 = arith.negf %383 : vector<2x64xf32>
    %385 = math.exp %384 : vector<2x64xf32>
    %cst_66 = arith.constant 1.000000e+00 : f32
    %386 = vector.broadcast %cst_66 : f32 to vector<2x64xf32>
    %387 = arith.addf %386, %385 : vector<2x64xf32>
    %388 = arith.divf %386, %387 : vector<2x64xf32>
    %389 = vector.extract_strided_slice %382 {offsets = [0, 64], sizes = [2, 64], strides = [1, 1]} : vector<2x256xf32> to vector<2x64xf32>
    %390 = arith.negf %389 : vector<2x64xf32>
    %391 = math.exp %390 : vector<2x64xf32>
    %cst_67 = arith.constant 1.000000e+00 : f32
    %392 = vector.broadcast %cst_67 : f32 to vector<2x64xf32>
    %393 = arith.addf %392, %391 : vector<2x64xf32>
    %394 = arith.divf %392, %393 : vector<2x64xf32>
    %395 = vector.extract_strided_slice %382 {offsets = [0, 128], sizes = [2, 64], strides = [1, 1]} : vector<2x256xf32> to vector<2x64xf32>
    %396 = math.tanh %395 : vector<2x64xf32>
    %397 = vector.extract_strided_slice %382 {offsets = [0, 192], sizes = [2, 64], strides = [1, 1]} : vector<2x256xf32> to vector<2x64xf32>
    %398 = arith.negf %397 : vector<2x64xf32>
    %399 = math.exp %398 : vector<2x64xf32>
    %cst_68 = arith.constant 1.000000e+00 : f32
    %400 = vector.broadcast %cst_68 : f32 to vector<2x64xf32>
    %401 = arith.addf %400, %399 : vector<2x64xf32>
    %402 = arith.divf %400, %401 : vector<2x64xf32>
    %403 = arith.mulf %394, %377 : vector<2x64xf32>
    %404 = arith.mulf %388, %396 : vector<2x64xf32>
    %405 = arith.addf %403, %404 : vector<2x64xf32>
    %406 = math.tanh %405 : vector<2x64xf32>
    %407 = arith.mulf %402, %406 : vector<2x64xf32>
    %408 = arith.truncf %407 : vector<2x64xf32> to vector<2x64xbf16>
    %cst_69 = arith.constant dense<0.000000e+00> : vector<2x256xf32>
    %409 = tpu.matmul %408, %281, %cst_69 {dimension_numbers = #tpu.dot_dimension_numbers<[1], [0], [0], [1], [0, 0, 1, 1], [], []>} : vector<2x64xbf16>, vector<64x256xbf16>, vector<2x256xf32> -> vector<2x256xf32>
    %410 = arith.addf %304, %409 : vector<2x256xf32>
    %411 = vector.extract_strided_slice %410 {offsets = [0, 0], sizes = [2, 64], strides = [1, 1]} : vector<2x256xf32> to vector<2x64xf32>
    %412 = arith.negf %411 : vector<2x64xf32>
    %413 = math.exp %412 : vector<2x64xf32>
    %cst_70 = arith.constant 1.000000e+00 : f32
    %414 = vector.broadcast %cst_70 : f32 to vector<2x64xf32>
    %415 = arith.addf %414, %413 : vector<2x64xf32>
    %416 = arith.divf %414, %415 : vector<2x64xf32>
    %417 = vector.extract_strided_slice %410 {offsets = [0, 64], sizes = [2, 64], strides = [1, 1]} : vector<2x256xf32> to vector<2x64xf32>
    %418 = arith.negf %417 : vector<2x64xf32>
    %419 = math.exp %418 : vector<2x64xf32>
    %cst_71 = arith.constant 1.000000e+00 : f32
    %420 = vector.broadcast %cst_71 : f32 to vector<2x64xf32>
    %421 = arith.addf %420, %419 : vector<2x64xf32>
    %422 = arith.divf %420, %421 : vector<2x64xf32>
    %423 = vector.extract_strided_slice %410 {offsets = [0, 128], sizes = [2, 64], strides = [1, 1]} : vector<2x256xf32> to vector<2x64xf32>
    %424 = math.tanh %423 : vector<2x64xf32>
    %425 = vector.extract_strided_slice %410 {offsets = [0, 192], sizes = [2, 64], strides = [1, 1]} : vector<2x256xf32> to vector<2x64xf32>
    %426 = arith.negf %425 : vector<2x64xf32>
    %427 = math.exp %426 : vector<2x64xf32>
    %cst_72 = arith.constant 1.000000e+00 : f32
    %428 = vector.broadcast %cst_72 : f32 to vector<2x64xf32>
    %429 = arith.addf %428, %427 : vector<2x64xf32>
    %430 = arith.divf %428, %429 : vector<2x64xf32>
    %431 = arith.mulf %422, %405 : vector<2x64xf32>
    %432 = arith.mulf %416, %424 : vector<2x64xf32>
    %433 = arith.addf %431, %432 : vector<2x64xf32>
    %434 = math.tanh %433 : vector<2x64xf32>
    %435 = arith.mulf %430, %434 : vector<2x64xf32>
    %436 = arith.truncf %435 : vector<2x64xf32> to vector<2x64xbf16>
    %cst_73 = arith.constant dense<0.000000e+00> : vector<2x256xf32>
    %437 = tpu.matmul %436, %281, %cst_73 {dimension_numbers = #tpu.dot_dimension_numbers<[1], [0], [0], [1], [0, 0, 1, 1], [], []>} : vector<2x64xbf16>, vector<64x256xbf16>, vector<2x256xf32> -> vector<2x256xf32>
    %438 = arith.addf %309, %437 : vector<2x256xf32>
    %439 = vector.extract_strided_slice %438 {offsets = [0, 0], sizes = [2, 64], strides = [1, 1]} : vector<2x256xf32> to vector<2x64xf32>
    %440 = arith.negf %439 : vector<2x64xf32>
    %441 = math.exp %440 : vector<2x64xf32>
    %cst_74 = arith.constant 1.000000e+00 : f32
    %442 = vector.broadcast %cst_74 : f32 to vector<2x64xf32>
    %443 = arith.addf %442, %441 : vector<2x64xf32>
    %444 = arith.divf %442, %443 : vector<2x64xf32>
    %445 = vector.extract_strided_slice %438 {offsets = [0, 64], sizes = [2, 64], strides = [1, 1]} : vector<2x256xf32> to vector<2x64xf32>
    %446 = arith.negf %445 : vector<2x64xf32>
    %447 = math.exp %446 : vector<2x64xf32>
    %cst_75 = arith.constant 1.000000e+00 : f32
    %448 = vector.broadcast %cst_75 : f32 to vector<2x64xf32>
    %449 = arith.addf %448, %447 : vector<2x64xf32>
    %450 = arith.divf %448, %449 : vector<2x64xf32>
    %451 = vector.extract_strided_slice %438 {offsets = [0, 128], sizes = [2, 64], strides = [1, 1]} : vector<2x256xf32> to vector<2x64xf32>
    %452 = math.tanh %451 : vector<2x64xf32>
    %453 = vector.extract_strided_slice %438 {offsets = [0, 192], sizes = [2, 64], strides = [1, 1]} : vector<2x256xf32> to vector<2x64xf32>
    %454 = arith.negf %453 : vector<2x64xf32>
    %455 = math.exp %454 : vector<2x64xf32>
    %cst_76 = arith.constant 1.000000e+00 : f32
    %456 = vector.broadcast %cst_76 : f32 to vector<2x64xf32>
    %457 = arith.addf %456, %455 : vector<2x64xf32>
    %458 = arith.divf %456, %457 : vector<2x64xf32>
    %459 = arith.mulf %450, %433 : vector<2x64xf32>
    %460 = arith.mulf %444, %452 : vector<2x64xf32>
    %461 = arith.addf %459, %460 : vector<2x64xf32>
    %462 = math.tanh %461 : vector<2x64xf32>
    %463 = arith.mulf %458, %462 : vector<2x64xf32>
    %464 = arith.truncf %463 : vector<2x64xf32> to vector<2x64xbf16>
    %cst_77 = arith.constant dense<0.000000e+00> : vector<2x256xf32>
    %465 = tpu.matmul %464, %281, %cst_77 {dimension_numbers = #tpu.dot_dimension_numbers<[1], [0], [0], [1], [0, 0, 1, 1], [], []>} : vector<2x64xbf16>, vector<64x256xbf16>, vector<2x256xf32> -> vector<2x256xf32>
    %466 = arith.addf %314, %465 : vector<2x256xf32>
    %467 = vector.extract_strided_slice %466 {offsets = [0, 0], sizes = [2, 64], strides = [1, 1]} : vector<2x256xf32> to vector<2x64xf32>
    %468 = arith.negf %467 : vector<2x64xf32>
    %469 = math.exp %468 : vector<2x64xf32>
    %cst_78 = arith.constant 1.000000e+00 : f32
    %470 = vector.broadcast %cst_78 : f32 to vector<2x64xf32>
    %471 = arith.addf %470, %469 : vector<2x64xf32>
    %472 = arith.divf %470, %471 : vector<2x64xf32>
    %473 = vector.extract_strided_slice %466 {offsets = [0, 64], sizes = [2, 64], strides = [1, 1]} : vector<2x256xf32> to vector<2x64xf32>
    %474 = arith.negf %473 : vector<2x64xf32>
    %475 = math.exp %474 : vector<2x64xf32>
    %cst_79 = arith.constant 1.000000e+00 : f32
    %476 = vector.broadcast %cst_79 : f32 to vector<2x64xf32>
    %477 = arith.addf %476, %475 : vector<2x64xf32>
    %478 = arith.divf %476, %477 : vector<2x64xf32>
    %479 = vector.extract_strided_slice %466 {offsets = [0, 128], sizes = [2, 64], strides = [1, 1]} : vector<2x256xf32> to vector<2x64xf32>
    %480 = math.tanh %479 : vector<2x64xf32>
    %481 = vector.extract_strided_slice %466 {offsets = [0, 192], sizes = [2, 64], strides = [1, 1]} : vector<2x256xf32> to vector<2x64xf32>
    %482 = arith.negf %481 : vector<2x64xf32>
    %483 = math.exp %482 : vector<2x64xf32>
    %cst_80 = arith.constant 1.000000e+00 : f32
    %484 = vector.broadcast %cst_80 : f32 to vector<2x64xf32>
    %485 = arith.addf %484, %483 : vector<2x64xf32>
    %486 = arith.divf %484, %485 : vector<2x64xf32>
    %487 = arith.mulf %478, %461 : vector<2x64xf32>
    %488 = arith.mulf %472, %480 : vector<2x64xf32>
    %489 = arith.addf %487, %488 : vector<2x64xf32>
    %490 = math.tanh %489 : vector<2x64xf32>
    %491 = arith.mulf %486, %490 : vector<2x64xf32>
    %492 = arith.truncf %491 : vector<2x64xf32> to vector<2x64xbf16>
    %cst_81 = arith.constant dense<0.000000e+00> : vector<2x256xf32>
    %493 = tpu.matmul %492, %281, %cst_81 {dimension_numbers = #tpu.dot_dimension_numbers<[1], [0], [0], [1], [0, 0, 1, 1], [], []>} : vector<2x64xbf16>, vector<64x256xbf16>, vector<2x256xf32> -> vector<2x256xf32>
    %494 = arith.addf %319, %493 : vector<2x256xf32>
    %495 = vector.extract_strided_slice %494 {offsets = [0, 0], sizes = [2, 64], strides = [1, 1]} : vector<2x256xf32> to vector<2x64xf32>
    %496 = arith.negf %495 : vector<2x64xf32>
    %497 = math.exp %496 : vector<2x64xf32>
    %cst_82 = arith.constant 1.000000e+00 : f32
    %498 = vector.broadcast %cst_82 : f32 to vector<2x64xf32>
    %499 = arith.addf %498, %497 : vector<2x64xf32>
    %500 = arith.divf %498, %499 : vector<2x64xf32>
    %501 = vector.extract_strided_slice %494 {offsets = [0, 64], sizes = [2, 64], strides = [1, 1]} : vector<2x256xf32> to vector<2x64xf32>
    %502 = arith.negf %501 : vector<2x64xf32>
    %503 = math.exp %502 : vector<2x64xf32>
    %cst_83 = arith.constant 1.000000e+00 : f32
    %504 = vector.broadcast %cst_83 : f32 to vector<2x64xf32>
    %505 = arith.addf %504, %503 : vector<2x64xf32>
    %506 = arith.divf %504, %505 : vector<2x64xf32>
    %507 = vector.extract_strided_slice %494 {offsets = [0, 128], sizes = [2, 64], strides = [1, 1]} : vector<2x256xf32> to vector<2x64xf32>
    %508 = math.tanh %507 : vector<2x64xf32>
    %509 = vector.extract_strided_slice %494 {offsets = [0, 192], sizes = [2, 64], strides = [1, 1]} : vector<2x256xf32> to vector<2x64xf32>
    %510 = arith.negf %509 : vector<2x64xf32>
    %511 = math.exp %510 : vector<2x64xf32>
    %cst_84 = arith.constant 1.000000e+00 : f32
    %512 = vector.broadcast %cst_84 : f32 to vector<2x64xf32>
    %513 = arith.addf %512, %511 : vector<2x64xf32>
    %514 = arith.divf %512, %513 : vector<2x64xf32>
    %515 = arith.mulf %506, %489 : vector<2x64xf32>
    %516 = arith.mulf %500, %508 : vector<2x64xf32>
    %517 = arith.addf %515, %516 : vector<2x64xf32>
    %518 = math.tanh %517 : vector<2x64xf32>
    %519 = arith.mulf %514, %518 : vector<2x64xf32>
    %520 = arith.truncf %519 : vector<2x64xf32> to vector<2x64xbf16>
    %cst_85 = arith.constant dense<0.000000e+00> : vector<2x256xf32>
    %521 = tpu.matmul %520, %281, %cst_85 {dimension_numbers = #tpu.dot_dimension_numbers<[1], [0], [0], [1], [0, 0, 1, 1], [], []>} : vector<2x64xbf16>, vector<64x256xbf16>, vector<2x256xf32> -> vector<2x256xf32>
    %522 = arith.addf %324, %521 : vector<2x256xf32>
    %523 = vector.extract_strided_slice %522 {offsets = [0, 0], sizes = [2, 64], strides = [1, 1]} : vector<2x256xf32> to vector<2x64xf32>
    %524 = arith.negf %523 : vector<2x64xf32>
    %525 = math.exp %524 : vector<2x64xf32>
    %cst_86 = arith.constant 1.000000e+00 : f32
    %526 = vector.broadcast %cst_86 : f32 to vector<2x64xf32>
    %527 = arith.addf %526, %525 : vector<2x64xf32>
    %528 = arith.divf %526, %527 : vector<2x64xf32>
    %529 = vector.extract_strided_slice %522 {offsets = [0, 64], sizes = [2, 64], strides = [1, 1]} : vector<2x256xf32> to vector<2x64xf32>
    %530 = arith.negf %529 : vector<2x64xf32>
    %531 = math.exp %530 : vector<2x64xf32>
    %cst_87 = arith.constant 1.000000e+00 : f32
    %532 = vector.broadcast %cst_87 : f32 to vector<2x64xf32>
    %533 = arith.addf %532, %531 : vector<2x64xf32>
    %534 = arith.divf %532, %533 : vector<2x64xf32>
    %535 = vector.extract_strided_slice %522 {offsets = [0, 128], sizes = [2, 64], strides = [1, 1]} : vector<2x256xf32> to vector<2x64xf32>
    %536 = math.tanh %535 : vector<2x64xf32>
    %537 = vector.extract_strided_slice %522 {offsets = [0, 192], sizes = [2, 64], strides = [1, 1]} : vector<2x256xf32> to vector<2x64xf32>
    %538 = arith.negf %537 : vector<2x64xf32>
    %539 = math.exp %538 : vector<2x64xf32>
    %cst_88 = arith.constant 1.000000e+00 : f32
    %540 = vector.broadcast %cst_88 : f32 to vector<2x64xf32>
    %541 = arith.addf %540, %539 : vector<2x64xf32>
    %542 = arith.divf %540, %541 : vector<2x64xf32>
    %543 = arith.mulf %534, %517 : vector<2x64xf32>
    %544 = arith.mulf %528, %536 : vector<2x64xf32>
    %545 = arith.addf %543, %544 : vector<2x64xf32>
    %546 = math.tanh %545 : vector<2x64xf32>
    %547 = arith.mulf %542, %546 : vector<2x64xf32>
    %548 = vector.extract_strided_slice %547 {offsets = [0, 0], sizes = [2, 32], strides = [1, 1]} : vector<2x64xf32> to vector<2x32xf32>
    %c0_89 = arith.constant 0 : index
    %c0_90 = arith.constant 0 : index
    %549 = vector.load %arg3[%c0_89, %c0_90] : memref<128x128xf32, #tpu.memory_space<vmem>>, vector<32x48xf32>
    %cst_91 = arith.constant dense<0.000000e+00> : vector<2x48xf32>
    %550 = tpu.matmul %548, %549, %cst_91 {dimension_numbers = #tpu.dot_dimension_numbers<[1], [0], [0], [1], [0, 0, 1, 1], [], []>} : vector<2x32xf32>, vector<32x48xf32>, vector<2x48xf32> -> vector<2x48xf32>
    %c32_92 = arith.constant 32 : index
    %c0_93 = arith.constant 0 : index
    %551 = vector.load %arg3[%c32_92, %c0_93] : memref<128x128xf32, #tpu.memory_space<vmem>>, vector<32x48xf32>
    %cst_94 = arith.constant dense<0.000000e+00> : vector<2x48xf32>
    %552 = tpu.matmul %352, %551, %cst_94 {dimension_numbers = #tpu.dot_dimension_numbers<[1], [0], [0], [1], [0, 0, 1, 1], [], []>} : vector<2x32xf32>, vector<32x48xf32>, vector<2x48xf32> -> vector<2x48xf32>
    %553 = arith.addf %550, %552 : vector<2x48xf32>
    %c64 = arith.constant 64 : index
    %c0_95 = arith.constant 0 : index
    %554 = vector.load %arg3[%c64, %c0_95] : memref<128x128xf32, #tpu.memory_space<vmem>>, vector<1x48xf32>
    %555 = vector.broadcast %554 : vector<1x48xf32> to vector<2x48xf32>
    %556 = arith.addf %553, %555 : vector<2x48xf32>
    %cst_96 = arith.constant 0.000000e+00 : f32
    %557 = vector.broadcast %cst_96 : f32 to vector<2x48xf32>
    %558 = arith.maximumf %556, %557 : vector<2x48xf32>
    %c72 = arith.constant 72 : index
    %c0_97 = arith.constant 0 : index
    %559 = vector.load %arg3[%c72, %c0_97] : memref<128x128xf32, #tpu.memory_space<vmem>>, vector<48x5xf32>
    %cst_98 = arith.constant dense<0.000000e+00> : vector<2x5xf32>
    %560 = tpu.matmul %558, %559, %cst_98 {dimension_numbers = #tpu.dot_dimension_numbers<[1], [0], [0], [1], [0, 0, 1, 1], [], []>} : vector<2x48xf32>, vector<48x5xf32>, vector<2x5xf32> -> vector<2x5xf32>
    %c120 = arith.constant 120 : index
    %c0_99 = arith.constant 0 : index
    %561 = vector.load %arg3[%c120, %c0_99] : memref<128x128xf32, #tpu.memory_space<vmem>>, vector<1x5xf32>
    %562 = vector.broadcast %561 : vector<1x5xf32> to vector<2x5xf32>
    %563 = arith.addf %560, %562 : vector<2x5xf32>
    %c0_100 = arith.constant 0 : index
    %c0_101 = arith.constant 0 : index
    %564 = vector.load %arg4[%c0_100, %c0_101] : memref<2x5xf32, #tpu.memory_space<vmem>>, vector<2x5xf32>
    tpu.vector_store %arg4[%c0_100, %c0_101], %563 {strides = array<i32>} : memref<2x5xf32, #tpu.memory_space<vmem>>, vector<2x5xf32>,
    return
  }
}

</mosaic_0001>

<llo_original>
// kernel: lstm_estimator_forward.1
$region0: #{lstm_estimator_forward.1}
  #allocation0 [shape = 'u32[]', space=smem, size = 0x4, offset = 0x4, fixed_abs, tag = 'smem constant byte address 0x4 - core index']
  #allocation1 [shape = 'u32[144,128]{1,0:T(1,128)}', space=vmem, size = 0x12000, scoped, tag = 'internal scratch']
  #allocation2 [shape = 'bf16[16,64]{1,0:T(16,128)(2,1)}', space=vmem, size = 0x1000, scoped, tag = 'scratch operand']
  %s0 = inlined_call_operand.vmem [shape: bf16[16,8], index: 0, kind: input, shape index: {}]
  %s1 = inlined_call_operand.hbm [shape: bf16[288,256], index: 1, kind: input, shape index: {}]
  %s2 = inlined_call_operand.vmem [shape: f32[2,256], index: 2, kind: input, shape index: {}]
  %s3 = inlined_call_operand.hbm [shape: f32[128,128], index: 3, kind: input, shape index: {}]
  %s4 = inlined_call_operand.hbm [shape: f32[2,5], index: 4, kind: output, shape index: {}]
  %s5 = sld [smem:[#allocation0]]
  $region34: #{lstm_estimator_forward.1} parent=0
    _
  %s7 = ssub.s32 1, %s5
  %s8 = scalar_select 0, %s7, %s5
  $region1: #{lstm_estimator_forward.1} parent=0
    #allocation3 [shape = 'u8[147456]{0}', space=vmem, size = 0x24000, scoped, tag = 'input window, operand 1, single buffered']
    #allocation4 [shape = 's32[1]{0}', space=sflag, size = 0x4, scoped, tag = 'scoped memory for lstm_estimator_forward.1']
    #allocation5 [shape = 's32[1]{0}', space=sflag, size = 0x4, scoped, tag = 'scoped memory for lstm_estimator_forward.1']
    #allocation6 [shape = 'u8[65536]{0}', space=vmem, size = 0x10000, scoped, tag = 'input window, operand 3, single buffered']
    #allocation7 [shape = 's32[1]{0}', space=sflag, size = 0x4, scoped, tag = 'scoped memory for lstm_estimator_forward.1']
    #allocation8 [shape = 'u8[1024]{0}', space=vmem, size = 0x400, scoped, tag = 'output window, operand 0, single buffered']
    %9 = vsyncpa [#allocation4], 0
    %10 = vsyncpa [#allocation7], 0
    %11 = vsyncpa [#allocation5], 0
    // Predicated region
    $region2: #{lstm_estimator_forward.1} parent=1 // pred_check
      _
    $region3: #{lstm_estimator_forward.1} parent=1 // pred_check_branch
      %13 = sbr.rel (0) target = $region5
    $region4: #{lstm_estimator_forward.1} parent=1 // pred_region
      _
    $region5: #{lstm_estimator_forward.1} parent=1 // pred_fallthru
      _
    // Predicated region
    $region6: #{lstm_estimator_forward.1} parent=1 // pred_check
      _
    $region7: #{lstm_estimator_forward.1} parent=1 // pred_check_branch
      %15 = sbr.rel (0) target = $region9
    $region8: #{lstm_estimator_forward.1} parent=1 // pred_region
      %s17 = ssub.s32 4608, 4608
      %18 = vsyncadd [#allocation4], %s17
      %s19 = sshll.u32 [#allocation3], 4
      %s20 = int_to_ptr.vmem [resolvable:$true] %s19
      %25 = dma.hbm_to_vmem [thread:$0]  %s1, 4608, %s20, [#allocation4], 128, 128, 8
    $region9: #{lstm_estimator_forward.1} parent=1 // pred_fallthru
      _
    // Predicated region
    $region10: #{lstm_estimator_forward.1} parent=1 // pred_check
      _
    $region11: #{lstm_estimator_forward.1} parent=1 // pred_check_branch
      %27 = sbr.rel (0) target = $region13
    $region12: #{lstm_estimator_forward.1} parent=1 // pred_region
      _
    $region13: #{lstm_estimator_forward.1} parent=1 // pred_fallthru
      _
    // Predicated region
    $region14: #{lstm_estimator_forward.1} parent=1 // pred_check
      _
    $region15: #{lstm_estimator_forward.1} parent=1 // pred_check_branch
      %29 = sbr.rel (0) target = $region17
    $region16: #{lstm_estimator_forward.1} parent=1 // pred_region
      %s31 = ssub.s32 2048, 2048
      %32 = vsyncadd [#allocation7], %s31
      %s33 = sshll.u32 [#allocation6], 4
      %s34 = int_to_ptr.vmem [resolvable:$true] %s33
      %39 = dma.hbm_to_vmem [thread:$0]  %s3, 2048, %s34, [#allocation7], 128, 128, 8
    $region17: #{lstm_estimator_forward.1} parent=1 // pred_fallthru
      _
    // Predicated region
    $region18: #{lstm_estimator_forward.1} parent=1 // pred_check
      _
    $region19: #{lstm_estimator_forward.1} parent=1 // pred_check_branch
      %41 = sbr.rel (0) target = $region21
    $region20: #{lstm_estimator_forward.1} parent=1 // pred_region
      %42 = dma.done [#allocation4], 4608
    $region21: #{lstm_estimator_forward.1} parent=1 // pred_fallthru
      _
    // Predicated region
    $region22: #{lstm_estimator_forward.1} parent=1 // pred_check
      _
    $region23: #{lstm_estimator_forward.1} parent=1 // pred_check_branch
      %44 = sbr.rel (0) target = $region25
    $region24: #{lstm_estimator_forward.1} parent=1 // pred_region
      %45 = dma.done [#allocation7], 2048
    $region25: #{lstm_estimator_forward.1} parent=1 // pred_fallthru
      _
    %v47 = vld [vmem:[%s0] sm:$0xf]
    %v48 = vld [vmem:[%s0 + $0x4] sm:$0xf]
    %v49 = vld [vmem:[#allocation3] sm:$0xff]
    %v50 = vld [vmem:[#allocation3 + $0x10] sm:$0xff]
    %v51 = vld [vmem:[#allocation3 + $0x20] sm:$0xff]
    %v52 = vld [vmem:[#allocation3 + $0x28] sm:$0xff]
    %v53 = vld [vmem:[#allocation3 + $0x30] sm:$0xff]
    %v54 = vld [vmem:[#allocation3 + $0x38] sm:$0xff]
    %v55 = vld [vmem:[#allocation3 + $0x40] sm:$0xff]
    %v56 = vld [vmem:[#allocation3 + $0x48] sm:$0xff]
    %v57 = vld [vmem:[#allocation3 + $0x50] sm:$0xff]
    %v58 = vld [vmem:[#allocation3 + $0x58] sm:$0xff]
    %v59 = vld [vmem:[%s2] ss:$2 sm:$0x3]
    %v62 = vunpack.c.l.b16 %v47
    %v63 = vunpack.c.l.b16 %v48
    %v64 = vpack.c.b16 %v63, %v62
    %v66 = vunpack.c.l.b16 %v49
    %v67 = vunpack.c.h.b16 %v49
    %v68 = vpack.c.b16 %v66, %v66
    %v69 = vpack.c.b16 %v67, %v67
    %vm70 = vcmask 64512
    %v72 = vsel %vm70, %v64, 0
    %vm74 = vcmask 1043456
    %v76 = vsel %vm74, %v68, 0
    %v79 = vsel %vm74, %v69, 0
    %81 = vmatprep.subr.bf16.mxu0 %v79
    %82 = vmatpush1.bf16.msra.mxu0 %v76
    %83 = vmatprep.subr.bf16.mxu0 0
    %84 = vmatpush1.bf16.msra.mxu0 0
    %85 = vmatprep.subr.bf16.mxu0 0
    %86 = vmatpush1.bf16.msra.mxu0 0
    %87 = vmatprep.subr.bf16.mxu0 0
    %88 = vmatpush1.bf16.msra.mxu0 0
    %89 = vmatprep.subr.bf16.mxu0 0
    %90 = vmatpush1.bf16.msra.mxu0 0
    %91 = vmatprep.subr.bf16.mxu0 0
    %92 = vmatpush1.bf16.msra.mxu0 0
    %93 = vmatprep.subr.bf16.mxu0 0
    %94 = vmatpush1.bf16.msra.mxu0 0
    %95 = vmatprep.subr.bf16.mxu0 0
    %96 = vmatpush1.bf16.msra.mxu0 0
    %97 = vmatprep.subr.bf16.mxu0 0
    %98 = vmatpush1.bf16.msra.mxu0 0
    %99 = vmatprep.subr.bf16.mxu0 0
    %100 = vmatpush1.bf16.msra.mxu0 0
    %101 = vmatprep.subr.bf16.mxu0 0
    %102 = vmatpush1.bf16.msra.mxu0 0
    %103 = vmatprep.subr.bf16.mxu0 0
    %104 = vmatpush1.bf16.msra.mxu0 0
    %105 = vmatprep.subr.bf16.mxu0 0
    %106 = vmatpush1.bf16.msra.mxu0 0
    %107 = vmatprep.subr.bf16.mxu0 0
    %108 = vmatpush1.bf16.msra.mxu0 0
    %109 = vmatprep.subr.bf16.mxu0 0
    %110 = vmatpush1.bf16.msra.mxu0 0
    %111 = vmatprep.subr.bf16.mxu0 0
    %112 = vmatpush1.bf16.msra.mxu0 0
    %113 = vmatprep.mubr.bf16.mxu0 0
    %114 = vmatmul.mubr.bf16.gmra.mrb[0].mxu0 %v72
    %v115 = vpop.f32.mrb[0].mxu0
    %v116 = vadd.f32 0.0, %v115
    %v117 = vpop.f32.mrb[0].mxu0
    %v118 = vadd.f32 0.0, %v117
    %v119 = vpop.f32.mrb[0].mxu0
    %v120 = vadd.f32 0.0, %v119
    %v121 = vpop.f32.mrb[0].mxu0
    %v122 = vadd.f32 0.0, %v121
    %123 = vdwg.mxu0
    %v125 = vunpack.c.l.b16 %v50
    %v126 = vunpack.c.h.b16 %v50
    %v127 = vpack.c.b16 %v125, %v125
    %v128 = vpack.c.b16 %v126, %v126
    %v130 = vsel %vm74, %v127, 0
    %v133 = vsel %vm74, %v128, 0
    %135 = vmatprep.subr.bf16.mxu0 %v133
    %136 = vmatpush1.bf16.msra.mxu0 %v130
    %137 = vmatprep.subr.bf16.mxu0 0
    %138 = vmatpush1.bf16.msra.mxu0 0
    %139 = vmatprep.subr.bf16.mxu0 0
    %140 = vmatpush1.bf16.msra.mxu0 0
    %141 = vmatprep.subr.bf16.mxu0 0
    %142 = vmatpush1.bf16.msra.mxu0 0
    %143 = vmatprep.subr.bf16.mxu0 0
    %144 = vmatpush1.bf16.msra.mxu0 0
    %145 = vmatprep.subr.bf16.mxu0 0
    %146 = vmatpush1.bf16.msra.mxu0 0
    %147 = vmatprep.subr.bf16.mxu0 0
    %148 = vmatpush1.bf16.msra.mxu0 0
    %149 = vmatprep.subr.bf16.mxu0 0
    %150 = vmatpush1.bf16.msra.mxu0 0
    %151 = vmatprep.subr.bf16.mxu0 0
    %152 = vmatpush1.bf16.msra.mxu0 0
    %153 = vmatprep.subr.bf16.mxu0 0
    %154 = vmatpush1.bf16.msra.mxu0 0
    %155 = vmatprep.subr.bf16.mxu0 0
    %156 = vmatpush1.bf16.msra.mxu0 0
    %157 = vmatprep.subr.bf16.mxu0 0
    %158 = vmatpush1.bf16.msra.mxu0 0
    %159 = vmatprep.subr.bf16.mxu0 0
    %160 = vmatpush1.bf16.msra.mxu0 0
    %161 = vmatprep.subr.bf16.mxu0 0
    %162 = vmatpush1.bf16.msra.mxu0 0
    %163 = vmatprep.subr.bf16.mxu0 0
    %164 = vmatpush1.bf16.msra.mxu0 0
    %165 = vmatprep.subr.bf16.mxu0 0
    %166 = vmatpush1.bf16.msra.mxu0 0
    %167 = vmatprep.mubr.bf16.mxu0 0
    %168 = vmatmul.mubr.bf16.gmra.mrb[0].mxu0 %v72
    %v169 = vpop.f32.mrb[0].mxu0
    %v170 = vadd.f32 0.0, %v169
    %v171 = vpop.f32.mrb[0].mxu0
    %v172 = vadd.f32 0.0, %v171
    %v173 = vpop.f32.mrb[0].mxu0
    %v174 = vadd.f32 0.0, %v173
    %v175 = vpop.f32.mrb[0].mxu0
    %v176 = vadd.f32 0.0, %v175
    %177 = vdwg.mxu0
    %v180 = vrot.slane %v174, 6
    %v181 = vrot.slane %v176, 6
    %v184 = vadd.f32 %v116, %v180
    %v185 = vadd.f32 %v118, %v181
    %v187 = vlaneseq
    %v188 = vshrl.u32 %v187, 7
    %v189 = vsub.s32 0, %v188
    %v190 = vrot.slane %v59, %v189
    %v191 = vlaneseq
    %v192 = vshrl.u32 %v191, 7
    %v193 = vsub.s32 1, %v192
    %v194 = vrot.slane %v59, %v193
    %v197 = vadd.f32 %v184, %v190
    %v198 = vadd.f32 %v185, %v194
    %v199 = vrot.slane %v174, 2
    %v200 = vrot.slane %v176, 2
    %v203 = vadd.f32 %v116, %v199
    %v204 = vadd.f32 %v118, %v200
    %v205 = vadd.f32 %v203, %v190
    %v206 = vadd.f32 %v204, %v194
    %v209 = vrot.slane %v170, 6
    %v210 = vrot.slane %v172, 6
    %v213 = vadd.f32 %v120, %v209
    %v214 = vadd.f32 %v122, %v210
    %v215 = vadd.f32 %v213, %v190
    %v216 = vadd.f32 %v214, %v194
    %v217 = vrot.slane %v170, 2
    %v218 = vrot.slane %v172, 2
    %v221 = vadd.f32 %v120, %v217
    %v222 = vadd.f32 %v122, %v218
    %v223 = vadd.f32 %v221, %v190
    %v224 = vadd.f32 %v222, %v194
    %v225 = vxor.u32 %v197, 2147483648
    %v226 = vmul.f32 %v225, 1.442695
    %v227 = vpow.pop %v226
    %v228 = vadd.f32 %v227, 1.0
    %v229 = vrcp.pop %v228
    %v230 = vmul.f32 1.0, %v229
    %v231 = vtanh.pop %v198
    %v232 = vxor.u32 %v198, 2147483648
    %v233 = vmul.f32 %v232, 1.442695
    %v234 = vpow.pop %v233
    %v235 = vadd.f32 %v234, 1.0
    %v236 = vrcp.pop %v235
    %v237 = vmul.f32 1.0, %v236
    %v238 = vmul.f32 %v230, 0.0
    %v239 = vmul.f32 %v230, %v231
    %241 = vrot.lane.b32.xlu0 %v239, 64
    %v242 = vpop.permute.xlu0 %241
    %v244 = vadd.f32 %v238, %v242
    %v245 = vtanh.pop %v244
    %v246 = vmul.f32 %v237, %v245
    %v247 = vpack.c.bf16 %v246, %v246
    %249 = vrot.lane.b32.xlu0 %v247, 64
    %v250 = vpop.permute.xlu0 %249
    %vm252 = vcmask 516096
    %253 = vst.msk [vmem:[#allocation2] sm:$0x1] %vm252, %v250
    %v262 = vunpack.c.l.b16 %v51
    %v263 = vunpack.c.h.b16 %v51
    %v264 = vunpack.c.l.b16 %v52
    %v265 = vunpack.c.h.b16 %v52
    %v266 = vunpack.c.l.b16 %v53
    %v267 = vunpack.c.h.b16 %v53
    %v268 = vunpack.c.l.b16 %v54
    %v269 = vunpack.c.h.b16 %v54
    %v270 = vunpack.c.l.b16 %v55
    %v271 = vunpack.c.h.b16 %v55
    %v272 = vunpack.c.l.b16 %v56
    %v273 = vunpack.c.h.b16 %v56
    %v274 = vunpack.c.l.b16 %v57
    %v275 = vunpack.c.h.b16 %v57
    %v276 = vunpack.c.l.b16 %v58
    %v277 = vunpack.c.h.b16 %v58
    %v278 = vpack.c.b16 %v264, %v262
    %v279 = vpack.c.b16 %v265, %v263
    %v280 = vpack.c.b16 %v268, %v266
    %v281 = vpack.c.b16 %v269, %v267
    %v282 = vpack.c.b16 %v272, %v270
    %v283 = vpack.c.b16 %v273, %v271
    %v284 = vpack.c.b16 %v276, %v274
    %v285 = vpack.c.b16 %v277, %v275
    %vm294 = vcmask 523264
    %v296 = vsel %vm294, %v250, 0
    %298 = vmatprep.subr.bf16.mxu0 %v279
    %299 = vmatpush1.bf16.msra.mxu0 %v278
    %300 = vmatprep.subr.bf16.mxu0 %v281
    %301 = vmatpush1.bf16.msra.mxu0 %v280
    %302 = vmatprep.subr.bf16.mxu0 %v283
    %303 = vmatpush1.bf16.msra.mxu0 %v282
    %304 = vmatprep.subr.bf16.mxu0 %v285
    %305 = vmatpush1.bf16.msra.mxu0 %v284
    %306 = vmatprep.subr.bf16.mxu0 0
    %307 = vmatpush1.bf16.msra.mxu0 0
    %308 = vmatprep.subr.bf16.mxu0 0
    %309 = vmatpush1.bf16.msra.mxu0 0
    %310 = vmatprep.subr.bf16.mxu0 0
    %311 = vmatpush1.bf16.msra.mxu0 0
    %312 = vmatprep.subr.bf16.mxu0 0
    %313 = vmatpush1.bf16.msra.mxu0 0
    %314 = vmatprep.subr.bf16.mxu0 0
    %315 = vmatpush1.bf16.msra.mxu0 0
    %316 = vmatprep.subr.bf16.mxu0 0
    %317 = vmatpush1.bf16.msra.mxu0 0
    %318 = vmatprep.subr.bf16.mxu0 0
    %319 = vmatpush1.bf16.msra.mxu0 0
    %320 = vmatprep.subr.bf16.mxu0 0
    %321 = vmatpush1.bf16.msra.mxu0 0
    %322 = vmatprep.subr.bf16.mxu0 0
    %323 = vmatpush1.bf16.msra.mxu0 0
    %324 = vmatprep.subr.bf16.mxu0 0
    %325 = vmatpush1.bf16.msra.mxu0 0
    %326 = vmatprep.subr.bf16.mxu0 0
    %327 = vmatpush1.bf16.msra.mxu0 0
    %328 = vmatprep.subr.bf16.mxu0 0
    %329 = vmatpush1.bf16.msra.mxu0 0
    %330 = vmatprep.mubr.bf16.mxu0 0
    %331 = vmatmul.mubr.bf16.gmra.mrb[0].mxu0 %v296
    %v332 = vpop.f32.mrb[0].mxu0
    %v333 = vadd.f32 0.0, %v332
    %v334 = vpop.f32.mrb[0].mxu0
    %v335 = vadd.f32 0.0, %v334
    %v336 = vpop.f32.mrb[0].mxu0
    %v337 = vpop.f32.mrb[0].mxu0
    %338 = vdwg.mxu0
    %v341 = vrot.slane %v333, 6
    %v342 = vrot.slane %v335, 6
    %v345 = vadd.f32 %v205, %v341
    %v346 = vadd.f32 %v206, %v342
    %v347 = vxor.u32 %v345, 2147483648
    %v348 = vmul.f32 %v347, 1.442695
    %v349 = vpow.pop %v348
    %v350 = vadd.f32 %v349, 1.0
    %v351 = vrcp.pop %v350
    %v352 = vmul.f32 1.0, %v351
    %v353 = vtanh.pop %v346
    %v354 = vxor.u32 %v346, 2147483648
    %v355 = vmul.f32 %v354, 1.442695
    %v356 = vpow.pop %v355
    %v357 = vadd.f32 %v356, 1.0
    %v358 = vrcp.pop %v357
    %v359 = vmul.f32 1.0, %v358
    %v361 = vrot.slane %v244, 6
    %v363 = vmul.f32 %v352, %v361
    %v364 = vmul.f32 %v352, %v353
    %366 = vrot.lane.b32.xlu0 %v364, 64
    %v367 = vpop.permute.xlu0 %366
    %v369 = vadd.f32 %v363, %v367
    %v370 = vtanh.pop %v369
    %v371 = vmul.f32 %v359, %v370
    %v372 = vpack.c.bf16 %v371, %v371
    %374 = vrot.lane.b32.xlu0 %v372, 64
    %v375 = vpop.permute.xlu0 %374
    %vm377 = vcmask 517121
    %378 = vst.msk [vmem:[#allocation2] sm:$0x2] %vm377, %v375
    %v379 = vrot.slane %v372, 1
    %380 = vrot.lane.b32.xlu0 %v379, 64
    %v381 = vpop.permute.xlu0 %380
    %v383 = vsel %vm294, %v381, 0
    %385 = vmatprep.subr.bf16.mxu0 %v279
    %386 = vmatpush1.bf16.msra.mxu0 %v278
    %387 = vmatprep.subr.bf16.mxu0 %v281
    %388 = vmatpush1.bf16.msra.mxu0 %v280
    %389 = vmatprep.subr.bf16.mxu0 %v283
    %390 = vmatpush1.bf16.msra.mxu0 %v282
    %391 = vmatprep.subr.bf16.mxu0 %v285
    %392 = vmatpush1.bf16.msra.mxu0 %v284
    %393 = vmatprep.subr.bf16.mxu0 0
    %394 = vmatpush1.bf16.msra.mxu0 0
    %395 = vmatprep.subr.bf16.mxu0 0
    %396 = vmatpush1.bf16.msra.mxu0 0
    %397 = vmatprep.subr.bf16.mxu0 0
    %398 = vmatpush1.bf16.msra.mxu0 0
    %399 = vmatprep.subr.bf16.mxu0 0
    %400 = vmatpush1.bf16.msra.mxu0 0
    %401 = vmatprep.subr.bf16.mxu0 0
    %402 = vmatpush1.bf16.msra.mxu0 0
    %403 = vmatprep.subr.bf16.mxu0 0
    %404 = vmatpush1.bf16.msra.mxu0 0
    %405 = vmatprep.subr.bf16.mxu0 0
    %406 = vmatpush1.bf16.msra.mxu0 0
    %407 = vmatprep.subr.bf16.mxu0 0
    %408 = vmatpush1.bf16.msra.mxu0 0
    %409 = vmatprep.subr.bf16.mxu0 0
    %410 = vmatpush1.bf16.msra.mxu0 0
    %411 = vmatprep.subr.bf16.mxu0 0
    %412 = vmatpush1.bf16.msra.mxu0 0
    %413 = vmatprep.subr.bf16.mxu0 0
    %414 = vmatpush1.bf16.msra.mxu0 0
    %415 = vmatprep.subr.bf16.mxu0 0
    %416 = vmatpush1.bf16.msra.mxu0 0
    %417 = vmatprep.mubr.bf16.mxu0 0
    %418 = vmatmul.mubr.bf16.gmra.mrb[0].mxu0 %v383
    %v419 = vpop.f32.mrb[0].mxu0
    %v420 = vadd.f32 0.0, %v419
    %v421 = vpop.f32.mrb[0].mxu0
    %v422 = vadd.f32 0.0, %v421
    %v423 = vpop.f32.mrb[0].mxu0
    %v424 = vpop.f32.mrb[0].mxu0
    %425 = vdwg.mxu0
    %v428 = vrot.slane %v420, 4
    %v429 = vrot.slane %v422, 4
    %v432 = vadd.f32 %v197, %v428
    %v433 = vadd.f32 %v198, %v429
    %v434 = vxor.u32 %v432, 2147483648
    %v435 = vmul.f32 %v434, 1.442695
    %v436 = vpow.pop %v435
    %v437 = vadd.f32 %v436, 1.0
    %v438 = vrcp.pop %v437
    %v439 = vmul.f32 1.0, %v438
    %v440 = vtanh.pop %v433
    %v441 = vxor.u32 %v433, 2147483648
    %v442 = vmul.f32 %v441, 1.442695
    %v443 = vpow.pop %v442
    %v444 = vadd.f32 %v443, 1.0
    %v445 = vrcp.pop %v444
    %v446 = vmul.f32 1.0, %v445
    %v448 = vrot.slane %v369, 6
    %v450 = vmul.f32 %v439, %v448
    %v451 = vmul.f32 %v439, %v440
    %453 = vrot.lane.b32.xlu0 %v451, 64
    %v454 = vpop.permute.xlu0 %453
    %v456 = vadd.f32 %v450, %v454
    %v457 = vtanh.pop %v456
    %v458 = vmul.f32 %v446, %v457
    %v459 = vpack.c.bf16 %v458, %v458
    %461 = vrot.lane.b32.xlu0 %v459, 64
    %v462 = vpop.permute.xlu0 %461
    %vm464 = vcmask 518146
    %465 = vst.msk [vmem:[#allocation2] sm:$0x4] %vm464, %v462
    %v466 = vrot.slane %v459, 2
    %467 = vrot.lane.b32.xlu0 %v466, 64
    %v468 = vpop.permute.xlu0 %467
    %v470 = vsel %vm294, %v468, 0
    %472 = vmatprep.subr.bf16.mxu0 %v279
    %473 = vmatpush1.bf16.msra.mxu0 %v278
    %474 = vmatprep.subr.bf16.mxu0 %v281
    %475 = vmatpush1.bf16.msra.mxu0 %v280
    %476 = vmatprep.subr.bf16.mxu0 %v283
    %477 = vmatpush1.bf16.msra.mxu0 %v282
    %478 = vmatprep.subr.bf16.mxu0 %v285
    %479 = vmatpush1.bf16.msra.mxu0 %v284
    %480 = vmatprep.subr.bf16.mxu0 0
    %481 = vmatpush1.bf16.msra.mxu0 0
    %482 = vmatprep.subr.bf16.mxu0 0
    %483 = vmatpush1.bf16.msra.mxu0 0
    %484 = vmatprep.subr.bf16.mxu0 0
    %485 = vmatpush1.bf16.msra.mxu0 0
    %486 = vmatprep.subr.bf16.mxu0 0
    %487 = vmatpush1.bf16.msra.mxu0 0
    %488 = vmatprep.subr.bf16.mxu0 0
    %489 = vmatpush1.bf16.msra.mxu0 0
    %490 = vmatprep.subr.bf16.mxu0 0
    %491 = vmatpush1.bf16.msra.mxu0 0
    %492 = vmatprep.subr.bf16.mxu0 0
    %493 = vmatpush1.bf16.msra.mxu0 0
    %494 = vmatprep.subr.bf16.mxu0 0
    %495 = vmatpush1.bf16.msra.mxu0 0
    %496 = vmatprep.subr.bf16.mxu0 0
    %497 = vmatpush1.bf16.msra.mxu0 0
    %498 = vmatprep.subr.bf16.mxu0 0
    %499 = vmatpush1.bf16.msra.mxu0 0
    %500 = vmatprep.subr.bf16.mxu0 0
    %501 = vmatpush1.bf16.msra.mxu0 0
    %502 = vmatprep.subr.bf16.mxu0 0
    %503 = vmatpush1.bf16.msra.mxu0 0
    %504 = vmatprep.mubr.bf16.mxu0 0
    %505 = vmatmul.mubr.bf16.gmra.mrb[0].mxu0 %v470
    %v506 = vpop.f32.mrb[0].mxu0
    %v507 = vadd.f32 0.0, %v506
    %v508 = vpop.f32.mrb[0].mxu0
    %v509 = vadd.f32 0.0, %v508
    %v510 = vpop.f32.mrb[0].mxu0
    %v511 = vpop.f32.mrb[0].mxu0
    %512 = vdwg.mxu0
    %v515 = vrot.slane %v507, 2
    %v516 = vrot.slane %v509, 2
    %v519 = vadd.f32 %v205, %v515
    %v520 = vadd.f32 %v206, %v516
    %v521 = vxor.u32 %v519, 2147483648
    %v522 = vmul.f32 %v521, 1.442695
    %v523 = vpow.pop %v522
    %v524 = vadd.f32 %v523, 1.0
    %v525 = vrcp.pop %v524
    %v526 = vmul.f32 1.0, %v525
    %v527 = vtanh.pop %v520
    %v528 = vxor.u32 %v520, 2147483648
    %v529 = vmul.f32 %v528, 1.442695
    %v530 = vpow.pop %v529
    %v531 = vadd.f32 %v530, 1.0
    %v532 = vrcp.pop %v531
    %v533 = vmul.f32 1.0, %v532
    %v535 = vrot.slane %v456, 6
    %v537 = vmul.f32 %v526, %v535
    %v538 = vmul.f32 %v526, %v527
    %540 = vrot.lane.b32.xlu0 %v538, 64
    %v541 = vpop.permute.xlu0 %540
    %v543 = vadd.f32 %v537, %v541
    %v544 = vtanh.pop %v543
    %v545 = vmul.f32 %v533, %v544
    %v546 = vpack.c.bf16 %v545, %v545
    %548 = vrot.lane.b32.xlu0 %v546, 64
    %v549 = vpop.permute.xlu0 %548
    %vm551 = vcmask 519171
    %552 = vst.msk [vmem:[#allocation2] sm:$0x8] %vm551, %v549
    %v553 = vrot.slane %v546, 3
    %554 = vrot.lane.b32.xlu0 %v553, 64
    %v555 = vpop.permute.xlu0 %554
    %v557 = vsel %vm294, %v555, 0
    %559 = vmatprep.subr.bf16.mxu0 %v279
    %560 = vmatpush1.bf16.msra.mxu0 %v278
    %561 = vmatprep.subr.bf16.mxu0 %v281
    %562 = vmatpush1.bf16.msra.mxu0 %v280
    %563 = vmatprep.subr.bf16.mxu0 %v283
    %564 = vmatpush1.bf16.msra.mxu0 %v282
    %565 = vmatprep.subr.bf16.mxu0 %v285
    %566 = vmatpush1.bf16.msra.mxu0 %v284
    %567 = vmatprep.subr.bf16.mxu0 0
    %568 = vmatpush1.bf16.msra.mxu0 0
    %569 = vmatprep.subr.bf16.mxu0 0
    %570 = vmatpush1.bf16.msra.mxu0 0
    %571 = vmatprep.subr.bf16.mxu0 0
    %572 = vmatpush1.bf16.msra.mxu0 0
    %573 = vmatprep.subr.bf16.mxu0 0
    %574 = vmatpush1.bf16.msra.mxu0 0
    %575 = vmatprep.subr.bf16.mxu0 0
    %576 = vmatpush1.bf16.msra.mxu0 0
    %577 = vmatprep.subr.bf16.mxu0 0
    %578 = vmatpush1.bf16.msra.mxu0 0
    %579 = vmatprep.subr.bf16.mxu0 0
    %580 = vmatpush1.bf16.msra.mxu0 0
    %581 = vmatprep.subr.bf16.mxu0 0
    %582 = vmatpush1.bf16.msra.mxu0 0
    %583 = vmatprep.subr.bf16.mxu0 0
    %584 = vmatpush1.bf16.msra.mxu0 0
    %585 = vmatprep.subr.bf16.mxu0 0
    %586 = vmatpush1.bf16.msra.mxu0 0
    %587 = vmatprep.subr.bf16.mxu0 0
    %588 = vmatpush1.bf16.msra.mxu0 0
    %589 = vmatprep.subr.bf16.mxu0 0
    %590 = vmatpush1.bf16.msra.mxu0 0
    %591 = vmatprep.mubr.bf16.mxu0 0
    %592 = vmatmul.mubr.bf16.gmra.mrb[0].mxu0 %v557
    %v593 = vpop.f32.mrb[0].mxu0
    %v594 = vadd.f32 0.0, %v593
    %v595 = vpop.f32.mrb[0].mxu0
    %v596 = vadd.f32 0.0, %v595
    %v597 = vpop.f32.mrb[0].mxu0
    %v598 = vpop.f32.mrb[0].mxu0
    %599 = vdwg.mxu0
    %v600 = vadd.f32 %v215, %v594
    %v601 = vadd.f32 %v216, %v596
    %v602 = vxor.u32 %v600, 2147483648
    %v603 = vmul.f32 %v602, 1.442695
    %v604 = vpow.pop %v603
    %v605 = vadd.f32 %v604, 1.0
    %v606 = vrcp.pop %v605
    %v607 = vmul.f32 1.0, %v606
    %v608 = vtanh.pop %v601
    %v609 = vxor.u32 %v601, 2147483648
    %v610 = vmul.f32 %v609, 1.442695
    %v611 = vpow.pop %v610
    %v612 = vadd.f32 %v611, 1.0
    %v613 = vrcp.pop %v612
    %v614 = vmul.f32 1.0, %v613
    %v616 = vrot.slane %v543, 6
    %v618 = vmul.f32 %v607, %v616
    %v619 = vmul.f32 %v607, %v608
    %621 = vrot.lane.b32.xlu0 %v619, 64
    %v622 = vpop.permute.xlu0 %621
    %v624 = vadd.f32 %v618, %v622
    %v625 = vtanh.pop %v624
    %v626 = vmul.f32 %v614, %v625
    %v627 = vpack.c.bf16 %v626, %v626
    %v629 = vrot.slane %v627, 4
    %630 = vrot.lane.b32.xlu0 %v629, 64
    %v631 = vpop.permute.xlu0 %630
    %vm633 = vcmask 520196
    %634 = vst.msk [vmem:[#allocation2] sm:$0x10] %vm633, %v631
    %635 = vrot.lane.b32.xlu0 %v627, 64
    %v636 = vpop.permute.xlu0 %635
    %v638 = vsel %vm294, %v636, 0
    %640 = vmatprep.subr.bf16.mxu0 %v279
    %641 = vmatpush1.bf16.msra.mxu0 %v278
    %642 = vmatprep.subr.bf16.mxu0 %v281
    %643 = vmatpush1.bf16.msra.mxu0 %v280
    %644 = vmatprep.subr.bf16.mxu0 %v283
    %645 = vmatpush1.bf16.msra.mxu0 %v282
    %646 = vmatprep.subr.bf16.mxu0 %v285
    %647 = vmatpush1.bf16.msra.mxu0 %v284
    %648 = vmatprep.subr.bf16.mxu0 0
    %649 = vmatpush1.bf16.msra.mxu0 0
    %650 = vmatprep.subr.bf16.mxu0 0
    %651 = vmatpush1.bf16.msra.mxu0 0
    %652 = vmatprep.subr.bf16.mxu0 0
    %653 = vmatpush1.bf16.msra.mxu0 0
    %654 = vmatprep.subr.bf16.mxu0 0
    %655 = vmatpush1.bf16.msra.mxu0 0
    %656 = vmatprep.subr.bf16.mxu0 0
    %657 = vmatpush1.bf16.msra.mxu0 0
    %658 = vmatprep.subr.bf16.mxu0 0
    %659 = vmatpush1.bf16.msra.mxu0 0
    %660 = vmatprep.subr.bf16.mxu0 0
    %661 = vmatpush1.bf16.msra.mxu0 0
    %662 = vmatprep.subr.bf16.mxu0 0
    %663 = vmatpush1.bf16.msra.mxu0 0
    %664 = vmatprep.subr.bf16.mxu0 0
    %665 = vmatpush1.bf16.msra.mxu0 0
    %666 = vmatprep.subr.bf16.mxu0 0
    %667 = vmatpush1.bf16.msra.mxu0 0
    %668 = vmatprep.subr.bf16.mxu0 0
    %669 = vmatpush1.bf16.msra.mxu0 0
    %670 = vmatprep.subr.bf16.mxu0 0
    %671 = vmatpush1.bf16.msra.mxu0 0
    %672 = vmatprep.mubr.bf16.mxu0 0
    %673 = vmatmul.mubr.bf16.gmra.mrb[0].mxu0 %v638
    %v674 = vpop.f32.mrb[0].mxu0
    %v675 = vadd.f32 0.0, %v674
    %v676 = vpop.f32.mrb[0].mxu0
    %v677 = vadd.f32 0.0, %v676
    %v678 = vpop.f32.mrb[0].mxu0
    %v679 = vpop.f32.mrb[0].mxu0
    %680 = vdwg.mxu0
    %v683 = vrot.slane %v675, 6
    %v684 = vrot.slane %v677, 6
    %v687 = vadd.f32 %v223, %v683
    %v688 = vadd.f32 %v224, %v684
    %v689 = vxor.u32 %v687, 2147483648
    %v690 = vmul.f32 %v689, 1.442695
    %v691 = vpow.pop %v690
    %v692 = vadd.f32 %v691, 1.0
    %v693 = vrcp.pop %v692
    %v694 = vmul.f32 1.0, %v693
    %v695 = vtanh.pop %v688
    %v696 = vxor.u32 %v688, 2147483648
    %v697 = vmul.f32 %v696, 1.442695
    %v698 = vpow.pop %v697
    %v699 = vadd.f32 %v698, 1.0
    %v700 = vrcp.pop %v699
    %v701 = vmul.f32 1.0, %v700
    %v703 = vrot.slane %v624, 6
    %v705 = vmul.f32 %v694, %v703
    %v706 = vmul.f32 %v694, %v695
    %708 = vrot.lane.b32.xlu0 %v706, 64
    %v709 = vpop.permute.xlu0 %708
    %v711 = vadd.f32 %v705, %v709
    %v712 = vtanh.pop %v711
    %v713 = vmul.f32 %v701, %v712
    %v714 = vpack.c.bf16 %v713, %v713
    %v716 = vrot.slane %v714, 4
    %717 = vrot.lane.b32.xlu0 %v716, 64
    %v718 = vpop.permute.xlu0 %717
    %vm720 = vcmask 521221
    %721 = vst.msk [vmem:[#allocation2] sm:$0x20] %vm720, %v718
    %v722 = vrot.slane %v714, 1
    %723 = vrot.lane.b32.xlu0 %v722, 64
    %v724 = vpop.permute.xlu0 %723
    %v726 = vsel %vm294, %v724, 0
    %728 = vmatprep.subr.bf16.mxu0 %v279
    %729 = vmatpush1.bf16.msra.mxu0 %v278
    %730 = vmatprep.subr.bf16.mxu0 %v281
    %731 = vmatpush1.bf16.msra.mxu0 %v280
    %732 = vmatprep.subr.bf16.mxu0 %v283
    %733 = vmatpush1.bf16.msra.mxu0 %v282
    %734 = vmatprep.subr.bf16.mxu0 %v285
    %735 = vmatpush1.bf16.msra.mxu0 %v284
    %736 = vmatprep.subr.bf16.mxu0 0
    %737 = vmatpush1.bf16.msra.mxu0 0
    %738 = vmatprep.subr.bf16.mxu0 0
    %739 = vmatpush1.bf16.msra.mxu0 0
    %740 = vmatprep.subr.bf16.mxu0 0
    %741 = vmatpush1.bf16.msra.mxu0 0
    %742 = vmatprep.subr.bf16.mxu0 0
    %743 = vmatpush1.bf16.msra.mxu0 0
    %744 = vmatprep.subr.bf16.mxu0 0
    %745 = vmatpush1.bf16.msra.mxu0 0
    %746 = vmatprep.subr.bf16.mxu0 0
    %747 = vmatpush1.bf16.msra.mxu0 0
    %748 = vmatprep.subr.bf16.mxu0 0
    %749 = vmatpush1.bf16.msra.mxu0 0
    %750 = vmatprep.subr.bf16.mxu0 0
    %751 = vmatpush1.bf16.msra.mxu0 0
    %752 = vmatprep.subr.bf16.mxu0 0
    %753 = vmatpush1.bf16.msra.mxu0 0
    %754 = vmatprep.subr.bf16.mxu0 0
    %755 = vmatpush1.bf16.msra.mxu0 0
    %756 = vmatprep.subr.bf16.mxu0 0
    %757 = vmatpush1.bf16.msra.mxu0 0
    %758 = vmatprep.subr.bf16.mxu0 0
    %759 = vmatpush1.bf16.msra.mxu0 0
    %760 = vmatprep.mubr.bf16.mxu0 0
    %761 = vmatmul.mubr.bf16.gmra.mrb[0].mxu0 %v726
    %v762 = vpop.f32.mrb[0].mxu0
    %v763 = vadd.f32 0.0, %v762
    %v764 = vpop.f32.mrb[0].mxu0
    %v765 = vadd.f32 0.0, %v764
    %v766 = vpop.f32.mrb[0].mxu0
    %v767 = vpop.f32.mrb[0].mxu0
    %768 = vdwg.mxu0
    %v771 = vrot.slane %v763, 4
    %v772 = vrot.slane %v765, 4
    %v775 = vadd.f32 %v215, %v771
    %v776 = vadd.f32 %v216, %v772
    %v777 = vxor.u32 %v775, 2147483648
    %v778 = vmul.f32 %v777, 1.442695
    %v779 = vpow.pop %v778
    %v780 = vadd.f32 %v779, 1.0
    %v781 = vrcp.pop %v780
    %v782 = vmul.f32 1.0, %v781
    %v783 = vtanh.pop %v776
    %v784 = vxor.u32 %v776, 2147483648
    %v785 = vmul.f32 %v784, 1.442695
    %v786 = vpow.pop %v785
    %v787 = vadd.f32 %v786, 1.0
    %v788 = vrcp.pop %v787
    %v789 = vmul.f32 1.0, %v788
    %v791 = vrot.slane %v711, 6
    %v793 = vmul.f32 %v782, %v791
    %v794 = vmul.f32 %v782, %v783
    %796 = vrot.lane.b32.xlu0 %v794, 64
    %v797 = vpop.permute.xlu0 %796
    %v799 = vadd.f32 %v793, %v797
    %v800 = vtanh.pop %v799
    %v801 = vmul.f32 %v789, %v800
    %v802 = vpack.c.bf16 %v801, %v801
    %v804 = vrot.slane %v802, 4
    %805 = vrot.lane.b32.xlu0 %v804, 64
    %v806 = vpop.permute.xlu0 %805
    %vm808 = vcmask 522246
    %809 = vst.msk [vmem:[#allocation2] sm:$0x40] %vm808, %v806
    %v810 = vrot.slane %v802, 2
    %811 = vrot.lane.b32.xlu0 %v810, 64
    %v812 = vpop.permute.xlu0 %811
    %v814 = vsel %vm294, %v812, 0
    %816 = vmatprep.subr.bf16.mxu0 %v279
    %817 = vmatpush1.bf16.msra.mxu0 %v278
    %818 = vmatprep.subr.bf16.mxu0 %v281
    %819 = vmatpush1.bf16.msra.mxu0 %v280
    %820 = vmatprep.subr.bf16.mxu0 %v283
    %821 = vmatpush1.bf16.msra.mxu0 %v282
    %822 = vmatprep.subr.bf16.mxu0 %v285
    %823 = vmatpush1.bf16.msra.mxu0 %v284
    %824 = vmatprep.subr.bf16.mxu0 0
    %825 = vmatpush1.bf16.msra.mxu0 0
    %826 = vmatprep.subr.bf16.mxu0 0
    %827 = vmatpush1.bf16.msra.mxu0 0
    %828 = vmatprep.subr.bf16.mxu0 0
    %829 = vmatpush1.bf16.msra.mxu0 0
    %830 = vmatprep.subr.bf16.mxu0 0
    %831 = vmatpush1.bf16.msra.mxu0 0
    %832 = vmatprep.subr.bf16.mxu0 0
    %833 = vmatpush1.bf16.msra.mxu0 0
    %834 = vmatprep.subr.bf16.mxu0 0
    %835 = vmatpush1.bf16.msra.mxu0 0
    %836 = vmatprep.subr.bf16.mxu0 0
    %837 = vmatpush1.bf16.msra.mxu0 0
    %838 = vmatprep.subr.bf16.mxu0 0
    %839 = vmatpush1.bf16.msra.mxu0 0
    %840 = vmatprep.subr.bf16.mxu0 0
    %841 = vmatpush1.bf16.msra.mxu0 0
    %842 = vmatprep.subr.bf16.mxu0 0
    %843 = vmatpush1.bf16.msra.mxu0 0
    %844 = vmatprep.subr.bf16.mxu0 0
    %845 = vmatpush1.bf16.msra.mxu0 0
    %846 = vmatprep.subr.bf16.mxu0 0
    %847 = vmatpush1.bf16.msra.mxu0 0
    %848 = vmatprep.mubr.bf16.mxu0 0
    %849 = vmatmul.mubr.bf16.gmra.mrb[0].mxu0 %v814
    %v850 = vpop.f32.mrb[0].mxu0
    %v851 = vadd.f32 0.0, %v850
    %v852 = vpop.f32.mrb[0].mxu0
    %v853 = vadd.f32 0.0, %v852
    %v854 = vpop.f32.mrb[0].mxu0
    %v855 = vpop.f32.mrb[0].mxu0
    %856 = vdwg.mxu0
    %v859 = vrot.slane %v851, 2
    %v860 = vrot.slane %v853, 2
    %v863 = vadd.f32 %v223, %v859
    %v864 = vadd.f32 %v224, %v860
    %v865 = vxor.u32 %v863, 2147483648
    %v866 = vmul.f32 %v865, 1.442695
    %v867 = vpow.pop %v866
    %v868 = vadd.f32 %v867, 1.0
    %v869 = vrcp.pop %v868
    %v870 = vmul.f32 1.0, %v869
    %v871 = vtanh.pop %v864
    %v872 = vxor.u32 %v864, 2147483648
    %v873 = vmul.f32 %v872, 1.442695
    %v874 = vpow.pop %v873
    %v875 = vadd.f32 %v874, 1.0
    %v876 = vrcp.pop %v875
    %v877 = vmul.f32 1.0, %v876
    %v879 = vrot.slane %v799, 6
    %v881 = vmul.f32 %v870, %v879
    %v882 = vmul.f32 %v870, %v871
    %884 = vrot.lane.b32.xlu0 %v882, 64
    %v885 = vpop.permute.xlu0 %884
    %v887 = vadd.f32 %v881, %v885
    %v888 = vtanh.pop %v887
    %v889 = vmul.f32 %v877, %v888
    %v890 = vpack.c.bf16 %v889, %v889
    %v892 = vrot.slane %v890, 4
    %893 = vrot.lane.b32.xlu0 %v892, 64
    %v894 = vpop.permute.xlu0 %893
    %vm896 = vcmask 523271
    %897 = vst.msk [vmem:[#allocation2] sm:$0x80] %vm896, %v894
    %v898 = vld [vmem:[#allocation2] sm:$0xff]
    %v899 = vld [vmem:[#allocation3 + $0x60] sm:$0xff]
    %v900 = vld [vmem:[#allocation3 + $0x68] sm:$0xff]
    %v901 = vld [vmem:[#allocation3 + $0x70] sm:$0xff]
    %v902 = vld [vmem:[#allocation3 + $0x78] sm:$0xff]
    %v903 = vld [vmem:[#allocation3 + $0x80] sm:$0xff]
    %v904 = vld [vmem:[#allocation3 + $0x88] sm:$0xff]
    %v905 = vld [vmem:[#allocation3 + $0x90] sm:$0xff]
    %v906 = vld [vmem:[#allocation3 + $0x98] sm:$0xff]
    %v907 = vld [vmem:[#allocation3 + $0xa0] sm:$0xff]
    %v908 = vld [vmem:[#allocation3 + $0xa8] sm:$0xff]
    %v909 = vld [vmem:[#allocation3 + $0xb0] sm:$0xff]
    %v910 = vld [vmem:[#allocation3 + $0xb8] sm:$0xff]
    %v911 = vld [vmem:[#allocation3 + $0xc0] sm:$0xff]
    %v912 = vld [vmem:[#allocation3 + $0xc8] sm:$0xff]
    %v913 = vld [vmem:[#allocation3 + $0xd0] sm:$0xff]
    %v914 = vld [vmem:[#allocation3 + $0xd8] sm:$0xff]
    %v915 = vld [vmem:[#allocation3 + $0xe0] sm:$0xff]
    %v916 = vld [vmem:[#allocation3 + $0xe8] sm:$0xff]
    %v917 = vld [vmem:[#allocation3 + $0xf0] sm:$0xff]
    %v918 = vld [vmem:[#allocation3 + $0xf8] sm:$0xff]
    %v919 = vld [vmem:[#allocation3 + $0x100] sm:$0xff]
    %v920 = vld [vmem:[#allocation3 + $0x108] sm:$0xff]
    %v921 = vld [vmem:[#allocation3 + $0x110] sm:$0xff]
    %v922 = vld [vmem:[#allocation3 + $0x118] sm:$0xff]
    %s923 = scalar_lea.vmem %s2, 1
    %v924 = vld [vmem:[%s923] ss:$2 sm:$0x3]
    %v933 = vunpack.c.l.b16 %v899
    %v934 = vunpack.c.h.b16 %v899
    %v935 = vunpack.c.l.b16 %v900
    %v936 = vunpack.c.h.b16 %v900
    %v937 = vunpack.c.l.b16 %v901
    %v938 = vunpack.c.h.b16 %v901
    %v939 = vunpack.c.l.b16 %v902
    %v940 = vunpack.c.h.b16 %v902
    %v941 = vunpack.c.l.b16 %v903
    %v942 = vunpack.c.h.b16 %v903
    %v943 = vunpack.c.l.b16 %v904
    %v944 = vunpack.c.h.b16 %v904
    %v945 = vunpack.c.l.b16 %v905
    %v946 = vunpack.c.h.b16 %v905
    %v947 = vunpack.c.l.b16 %v906
    %v948 = vunpack.c.h.b16 %v906
    %v949 = vpack.c.b16 %v935, %v933
    %v950 = vpack.c.b16 %v936, %v934
    %v951 = vpack.c.b16 %v939, %v937
    %v952 = vpack.c.b16 %v940, %v938
    %v953 = vpack.c.b16 %v943, %v941
    %v954 = vpack.c.b16 %v944, %v942
    %v955 = vpack.c.b16 %v947, %v945
    %v956 = vpack.c.b16 %v948, %v946
    %v966 = vsel %vm294, %v898, 0
    %968 = vmatprep.subr.bf16.mxu0 %v950
    %969 = vmatpush1.bf16.msra.mxu0 %v949
    %970 = vmatprep.subr.bf16.mxu0 %v952
    %971 = vmatpush1.bf16.msra.mxu0 %v951
    %972 = vmatprep.subr.bf16.mxu0 %v954
    %973 = vmatpush1.bf16.msra.mxu0 %v953
    %974 = vmatprep.subr.bf16.mxu0 %v956
    %975 = vmatpush1.bf16.msra.mxu0 %v955
    %976 = vmatprep.subr.bf16.mxu0 0
    %977 = vmatpush1.bf16.msra.mxu0 0
    %978 = vmatprep.subr.bf16.mxu0 0
    %979 = vmatpush1.bf16.msra.mxu0 0
    %980 = vmatprep.subr.bf16.mxu0 0
    %981 = vmatpush1.bf16.msra.mxu0 0
    %982 = vmatprep.subr.bf16.mxu0 0
    %983 = vmatpush1.bf16.msra.mxu0 0
    %984 = vmatprep.subr.bf16.mxu0 0
    %985 = vmatpush1.bf16.msra.mxu0 0
    %986 = vmatprep.subr.bf16.mxu0 0
    %987 = vmatpush1.bf16.msra.mxu0 0
    %988 = vmatprep.subr.bf16.mxu0 0
    %989 = vmatpush1.bf16.msra.mxu0 0
    %990 = vmatprep.subr.bf16.mxu0 0
    %991 = vmatpush1.bf16.msra.mxu0 0
    %992 = vmatprep.subr.bf16.mxu0 0
    %993 = vmatpush1.bf16.msra.mxu0 0
    %994 = vmatprep.subr.bf16.mxu0 0
    %995 = vmatpush1.bf16.msra.mxu0 0
    %996 = vmatprep.subr.bf16.mxu0 0
    %997 = vmatpush1.bf16.msra.mxu0 0
    %998 = vmatprep.subr.bf16.mxu0 0
    %999 = vmatpush1.bf16.msra.mxu0 0
    %1000 = vmatprep.mubr.bf16.mxu0 0
    %1001 = vmatmul.mubr.bf16.gmra.mrb[0].mxu0 %v966
    %v1002 = vpop.f32.mrb[0].mxu0
    %v1003 = vadd.f32 0.0, %v1002
    %v1004 = vpop.f32.mrb[0].mxu0
    %v1005 = vadd.f32 0.0, %v1004
    %v1006 = vpop.f32.mrb[0].mxu0
    %v1007 = vadd.f32 0.0, %v1006
    %v1008 = vpop.f32.mrb[0].mxu0
    %v1009 = vadd.f32 0.0, %v1008
    %1010 = vdwg.mxu0
    %v1019 = vunpack.c.l.b16 %v907
    %v1020 = vunpack.c.h.b16 %v907
    %v1021 = vunpack.c.l.b16 %v908
    %v1022 = vunpack.c.h.b16 %v908
    %v1023 = vunpack.c.l.b16 %v909
    %v1024 = vunpack.c.h.b16 %v909
    %v1025 = vunpack.c.l.b16 %v910
    %v1026 = vunpack.c.h.b16 %v910
    %v1027 = vunpack.c.l.b16 %v911
    %v1028 = vunpack.c.h.b16 %v911
    %v1029 = vunpack.c.l.b16 %v912
    %v1030 = vunpack.c.h.b16 %v912
    %v1031 = vunpack.c.l.b16 %v913
    %v1032 = vunpack.c.h.b16 %v913
    %v1033 = vunpack.c.l.b16 %v914
    %v1034 = vunpack.c.h.b16 %v914
    %v1035 = vpack.c.b16 %v1021, %v1019
    %v1036 = vpack.c.b16 %v1022, %v1020
    %v1037 = vpack.c.b16 %v1025, %v1023
    %v1038 = vpack.c.b16 %v1026, %v1024
    %v1039 = vpack.c.b16 %v1029, %v1027
    %v1040 = vpack.c.b16 %v1030, %v1028
    %v1041 = vpack.c.b16 %v1033, %v1031
    %v1042 = vpack.c.b16 %v1034, %v1032
    %1051 = vmatprep.subr.bf16.mxu0 %v1036
    %1052 = vmatpush1.bf16.msra.mxu0 %v1035
    %1053 = vmatprep.subr.bf16.mxu0 %v1038
    %1054 = vmatpush1.bf16.msra.mxu0 %v1037
    %1055 = vmatprep.subr.bf16.mxu0 %v1040
    %1056 = vmatpush1.bf16.msra.mxu0 %v1039
    %1057 = vmatprep.subr.bf16.mxu0 %v1042
    %1058 = vmatpush1.bf16.msra.mxu0 %v1041
    %1059 = vmatprep.subr.bf16.mxu0 0
    %1060 = vmatpush1.bf16.msra.mxu0 0
    %1061 = vmatprep.subr.bf16.mxu0 0
    %1062 = vmatpush1.bf16.msra.mxu0 0
    %1063 = vmatprep.subr.bf16.mxu0 0
    %1064 = vmatpush1.bf16.msra.mxu0 0
    %1065 = vmatprep.subr.bf16.mxu0 0
    %1066 = vmatpush1.bf16.msra.mxu0 0
    %1067 = vmatprep.subr.bf16.mxu0 0
    %1068 = vmatpush1.bf16.msra.mxu0 0
    %1069 = vmatprep.subr.bf16.mxu0 0
    %1070 = vmatpush1.bf16.msra.mxu0 0
    %1071 = vmatprep.subr.bf16.mxu0 0
    %1072 = vmatpush1.bf16.msra.mxu0 0
    %1073 = vmatprep.subr.bf16.mxu0 0
    %1074 = vmatpush1.bf16.msra.mxu0 0
    %1075 = vmatprep.subr.bf16.mxu0 0
    %1076 = vmatpush1.bf16.msra.mxu0 0
    %1077 = vmatprep.subr.bf16.mxu0 0
    %1078 = vmatpush1.bf16.msra.mxu0 0
    %1079 = vmatprep.subr.bf16.mxu0 0
    %1080 = vmatpush1.bf16.msra.mxu0 0
    %1081 = vmatprep.subr.bf16.mxu0 0
    %1082 = vmatpush1.bf16.msra.mxu0 0
    %1083 = vmatprep.mubr.bf16.mxu0 0
    %1084 = vmatmul.mubr.bf16.gmra.mrb[0].mxu0 %v966
    %v1085 = vpop.f32.mrb[0].mxu0
    %v1086 = vadd.f32 0.0, %v1085
    %v1087 = vpop.f32.mrb[0].mxu0
    %v1088 = vadd.f32 0.0, %v1087
    %v1089 = vpop.f32.mrb[0].mxu0
    %v1090 = vadd.f32 0.0, %v1089
    %v1091 = vpop.f32.mrb[0].mxu0
    %v1092 = vadd.f32 0.0, %v1091
    %1093 = vdwg.mxu0
    %v1096 = vrot.slane %v1090, 6
    %v1097 = vrot.slane %v1092, 6
    %v1100 = vadd.f32 %v1003, %v1096
    %v1101 = vadd.f32 %v1005, %v1097
    %v1103 = vlaneseq
    %v1104 = vshrl.u32 %v1103, 7
    %v1105 = vsub.s32 0, %v1104
    %v1106 = vrot.slane %v924, %v1105
    %v1107 = vlaneseq
    %v1108 = vshrl.u32 %v1107, 7
    %v1109 = vsub.s32 1, %v1108
    %v1110 = vrot.slane %v924, %v1109
    %v1113 = vadd.f32 %v1100, %v1106
    %v1114 = vadd.f32 %v1101, %v1110
    %v1115 = vrot.slane %v1090, 2
    %v1116 = vrot.slane %v1092, 2
    %v1119 = vadd.f32 %v1003, %v1115
    %v1120 = vadd.f32 %v1005, %v1116
    %v1121 = vadd.f32 %v1119, %v1106
    %v1122 = vadd.f32 %v1120, %v1110
    %v1125 = vrot.slane %v1086, 6
    %v1126 = vrot.slane %v1088, 6
    %v1129 = vadd.f32 %v1007, %v1125
    %v1130 = vadd.f32 %v1009, %v1126
    %v1131 = vadd.f32 %v1129, %v1106
    %v1132 = vadd.f32 %v1130, %v1110
    %v1133 = vrot.slane %v1086, 2
    %v1134 = vrot.slane %v1088, 2
    %v1137 = vadd.f32 %v1007, %v1133
    %v1138 = vadd.f32 %v1009, %v1134
    %v1139 = vadd.f32 %v1137, %v1106
    %v1140 = vadd.f32 %v1138, %v1110
    %v1141 = vxor.u32 %v1113, 2147483648
    %v1142 = vmul.f32 %v1141, 1.442695
    %v1143 = vpow.pop %v1142
    %v1144 = vadd.f32 %v1143, 1.0
    %v1145 = vrcp.pop %v1144
    %v1146 = vmul.f32 1.0, %v1145
    %v1147 = vtanh.pop %v1114
    %v1148 = vxor.u32 %v1114, 2147483648
    %v1149 = vmul.f32 %v1148, 1.442695
    %v1150 = vpow.pop %v1149
    %v1151 = vadd.f32 %v1150, 1.0
    %v1152 = vrcp.pop %v1151
    %v1153 = vmul.f32 1.0, %v1152
    %v1154 = vmul.f32 %v1146, 0.0
    %v1155 = vmul.f32 %v1146, %v1147
    %1157 = vrot.lane.b32.xlu0 %v1155, 64
    %v1158 = vpop.permute.xlu0 %1157
    %v1160 = vadd.f32 %v1154, %v1158
    %v1161 = vtanh.pop %v1160
    %v1162 = vmul.f32 %v1153, %v1161
    %v1163 = vpack.c.bf16 %v1162, %v1162
    %1165 = vrot.lane.b32.xlu0 %v1163, 64
    %v1166 = vpop.permute.xlu0 %1165
    %v1175 = vunpack.c.l.b16 %v915
    %v1176 = vunpack.c.h.b16 %v915
    %v1177 = vunpack.c.l.b16 %v916
    %v1178 = vunpack.c.h.b16 %v916
    %v1179 = vunpack.c.l.b16 %v917
    %v1180 = vunpack.c.h.b16 %v917
    %v1181 = vunpack.c.l.b16 %v918
    %v1182 = vunpack.c.h.b16 %v918
    %v1183 = vunpack.c.l.b16 %v919
    %v1184 = vunpack.c.h.b16 %v919
    %v1185 = vunpack.c.l.b16 %v920
    %v1186 = vunpack.c.h.b16 %v920
    %v1187 = vunpack.c.l.b16 %v921
    %v1188 = vunpack.c.h.b16 %v921
    %v1189 = vunpack.c.l.b16 %v922
    %v1190 = vunpack.c.h.b16 %v922
    %v1191 = vpack.c.b16 %v1177, %v1175
    %v1192 = vpack.c.b16 %v1178, %v1176
    %v1193 = vpack.c.b16 %v1181, %v1179
    %v1194 = vpack.c.b16 %v1182, %v1180
    %v1195 = vpack.c.b16 %v1185, %v1183
    %v1196 = vpack.c.b16 %v1186, %v1184
    %v1197 = vpack.c.b16 %v1189, %v1187
    %v1198 = vpack.c.b16 %v1190, %v1188
    %v1208 = vsel %vm294, %v1166, 0
    %1210 = vmatprep.subr.bf16.mxu0 %v1192
    %1211 = vmatpush1.bf16.msra.mxu0 %v1191
    %1212 = vmatprep.subr.bf16.mxu0 %v1194
    %1213 = vmatpush1.bf16.msra.mxu0 %v1193
    %1214 = vmatprep.subr.bf16.mxu0 %v1196
    %1215 = vmatpush1.bf16.msra.mxu0 %v1195
    %1216 = vmatprep.subr.bf16.mxu0 %v1198
    %1217 = vmatpush1.bf16.msra.mxu0 %v1197
    %1218 = vmatprep.subr.bf16.mxu0 0
    %1219 = vmatpush1.bf16.msra.mxu0 0
    %1220 = vmatprep.subr.bf16.mxu0 0
    %1221 = vmatpush1.bf16.msra.mxu0 0
    %1222 = vmatprep.subr.bf16.mxu0 0
    %1223 = vmatpush1.bf16.msra.mxu0 0
    %1224 = vmatprep.subr.bf16.mxu0 0
    %1225 = vmatpush1.bf16.msra.mxu0 0
    %1226 = vmatprep.subr.bf16.mxu0 0
    %1227 = vmatpush1.bf16.msra.mxu0 0
    %1228 = vmatprep.subr.bf16.mxu0 0
    %1229 = vmatpush1.bf16.msra.mxu0 0
    %1230 = vmatprep.subr.bf16.mxu0 0
    %1231 = vmatpush1.bf16.msra.mxu0 0
    %1232 = vmatprep.subr.bf16.mxu0 0
    %1233 = vmatpush1.bf16.msra.mxu0 0
    %1234 = vmatprep.subr.bf16.mxu0 0
    %1235 = vmatpush1.bf16.msra.mxu0 0
    %1236 = vmatprep.subr.bf16.mxu0 0
    %1237 = vmatpush1.bf16.msra.mxu0 0
    %1238 = vmatprep.subr.bf16.mxu0 0
    %1239 = vmatpush1.bf16.msra.mxu0 0
    %1240 = vmatprep.subr.bf16.mxu0 0
    %1241 = vmatpush1.bf16.msra.mxu0 0
    %1242 = vmatprep.mubr.bf16.mxu0 0
    %1243 = vmatmul.mubr.bf16.gmra.mrb[0].mxu0 %v1208
    %v1244 = vpop.f32.mrb[0].mxu0
    %v1245 = vadd.f32 0.0, %v1244
    %v1246 = vpop.f32.mrb[0].mxu0
    %v1247 = vadd.f32 0.0, %v1246
    %v1248 = vpop.f32.mrb[0].mxu0
    %v1249 = vpop.f32.mrb[0].mxu0
    %1250 = vdwg.mxu0
    %v1253 = vrot.slane %v1245, 6
    %v1254 = vrot.slane %v1247, 6
    %v1257 = vadd.f32 %v1121, %v1253
    %v1258 = vadd.f32 %v1122, %v1254
    %v1259 = vxor.u32 %v1257, 2147483648
    %v1260 = vmul.f32 %v1259, 1.442695
    %v1261 = vpow.pop %v1260
    %v1262 = vadd.f32 %v1261, 1.0
    %v1263 = vrcp.pop %v1262
    %v1264 = vmul.f32 1.0, %v1263
    %v1265 = vtanh.pop %v1258
    %v1266 = vxor.u32 %v1258, 2147483648
    %v1267 = vmul.f32 %v1266, 1.442695
    %v1268 = vpow.pop %v1267
    %v1269 = vadd.f32 %v1268, 1.0
    %v1270 = vrcp.pop %v1269
    %v1271 = vmul.f32 1.0, %v1270
    %v1273 = vrot.slane %v1160, 6
    %v1275 = vmul.f32 %v1264, %v1273
    %v1276 = vmul.f32 %v1264, %v1265
    %1278 = vrot.lane.b32.xlu0 %v1276, 64
    %v1279 = vpop.permute.xlu0 %1278
    %v1281 = vadd.f32 %v1275, %v1279
    %v1282 = vtanh.pop %v1281
    %v1283 = vmul.f32 %v1271, %v1282
    %v1284 = vpack.c.bf16 %v1283, %v1283
    %v1286 = vrot.slane %v1284, 1
    %1287 = vrot.lane.b32.xlu0 %v1286, 64
    %v1288 = vpop.permute.xlu0 %1287
    %v1290 = vsel %vm294, %v1288, 0
    %1292 = vmatprep.subr.bf16.mxu0 %v1192
    %1293 = vmatpush1.bf16.msra.mxu0 %v1191
    %1294 = vmatprep.subr.bf16.mxu0 %v1194
    %1295 = vmatpush1.bf16.msra.mxu0 %v1193
    %1296 = vmatprep.subr.bf16.mxu0 %v1196
    %1297 = vmatpush1.bf16.msra.mxu0 %v1195
    %1298 = vmatprep.subr.bf16.mxu0 %v1198
    %1299 = vmatpush1.bf16.msra.mxu0 %v1197
    %1300 = vmatprep.subr.bf16.mxu0 0
    %1301 = vmatpush1.bf16.msra.mxu0 0
    %1302 = vmatprep.subr.bf16.mxu0 0
    %1303 = vmatpush1.bf16.msra.mxu0 0
    %1304 = vmatprep.subr.bf16.mxu0 0
    %1305 = vmatpush1.bf16.msra.mxu0 0
    %1306 = vmatprep.subr.bf16.mxu0 0
    %1307 = vmatpush1.bf16.msra.mxu0 0
    %1308 = vmatprep.subr.bf16.mxu0 0
    %1309 = vmatpush1.bf16.msra.mxu0 0
    %1310 = vmatprep.subr.bf16.mxu0 0
    %1311 = vmatpush1.bf16.msra.mxu0 0
    %1312 = vmatprep.subr.bf16.mxu0 0
    %1313 = vmatpush1.bf16.msra.mxu0 0
    %1314 = vmatprep.subr.bf16.mxu0 0
    %1315 = vmatpush1.bf16.msra.mxu0 0
    %1316 = vmatprep.subr.bf16.mxu0 0
    %1317 = vmatpush1.bf16.msra.mxu0 0
    %1318 = vmatprep.subr.bf16.mxu0 0
    %1319 = vmatpush1.bf16.msra.mxu0 0
    %1320 = vmatprep.subr.bf16.mxu0 0
    %1321 = vmatpush1.bf16.msra.mxu0 0
    %1322 = vmatprep.subr.bf16.mxu0 0
    %1323 = vmatpush1.bf16.msra.mxu0 0
    %1324 = vmatprep.mubr.bf16.mxu0 0
    %1325 = vmatmul.mubr.bf16.gmra.mrb[0].mxu0 %v1290
    %v1326 = vpop.f32.mrb[0].mxu0
    %v1327 = vadd.f32 0.0, %v1326
    %v1328 = vpop.f32.mrb[0].mxu0
    %v1329 = vadd.f32 0.0, %v1328
    %v1330 = vpop.f32.mrb[0].mxu0
    %v1331 = vpop.f32.mrb[0].mxu0
    %1332 = vdwg.mxu0
    %v1335 = vrot.slane %v1327, 4
    %v1336 = vrot.slane %v1329, 4
    %v1339 = vadd.f32 %v1113, %v1335
    %v1340 = vadd.f32 %v1114, %v1336
    %v1341 = vxor.u32 %v1339, 2147483648
    %v1342 = vmul.f32 %v1341, 1.442695
    %v1343 = vpow.pop %v1342
    %v1344 = vadd.f32 %v1343, 1.0
    %v1345 = vrcp.pop %v1344
    %v1346 = vmul.f32 1.0, %v1345
    %v1347 = vtanh.pop %v1340
    %v1348 = vxor.u32 %v1340, 2147483648
    %v1349 = vmul.f32 %v1348, 1.442695
    %v1350 = vpow.pop %v1349
    %v1351 = vadd.f32 %v1350, 1.0
    %v1352 = vrcp.pop %v1351
    %v1353 = vmul.f32 1.0, %v1352
    %v1355 = vrot.slane %v1281, 6
    %v1357 = vmul.f32 %v1346, %v1355
    %v1358 = vmul.f32 %v1346, %v1347
    %1360 = vrot.lane.b32.xlu0 %v1358, 64
    %v1361 = vpop.permute.xlu0 %1360
    %v1363 = vadd.f32 %v1357, %v1361
    %v1364 = vtanh.pop %v1363
    %v1365 = vmul.f32 %v1353, %v1364
    %v1366 = vpack.c.bf16 %v1365, %v1365
    %v1368 = vrot.slane %v1366, 2
    %1369 = vrot.lane.b32.xlu0 %v1368, 64
    %v1370 = vpop.permute.xlu0 %1369
    %v1372 = vsel %vm294, %v1370, 0
    %1374 = vmatprep.subr.bf16.mxu0 %v1192
    %1375 = vmatpush1.bf16.msra.mxu0 %v1191
    %1376 = vmatprep.subr.bf16.mxu0 %v1194
    %1377 = vmatpush1.bf16.msra.mxu0 %v1193
    %1378 = vmatprep.subr.bf16.mxu0 %v1196
    %1379 = vmatpush1.bf16.msra.mxu0 %v1195
    %1380 = vmatprep.subr.bf16.mxu0 %v1198
    %1381 = vmatpush1.bf16.msra.mxu0 %v1197
    %1382 = vmatprep.subr.bf16.mxu0 0
    %1383 = vmatpush1.bf16.msra.mxu0 0
    %1384 = vmatprep.subr.bf16.mxu0 0
    %1385 = vmatpush1.bf16.msra.mxu0 0
    %1386 = vmatprep.subr.bf16.mxu0 0
    %1387 = vmatpush1.bf16.msra.mxu0 0
    %1388 = vmatprep.subr.bf16.mxu0 0
    %1389 = vmatpush1.bf16.msra.mxu0 0
    %1390 = vmatprep.subr.bf16.mxu0 0
    %1391 = vmatpush1.bf16.msra.mxu0 0
    %1392 = vmatprep.subr.bf16.mxu0 0
    %1393 = vmatpush1.bf16.msra.mxu0 0
    %1394 = vmatprep.subr.bf16.mxu0 0
    %1395 = vmatpush1.bf16.msra.mxu0 0
    %1396 = vmatprep.subr.bf16.mxu0 0
    %1397 = vmatpush1.bf16.msra.mxu0 0
    %1398 = vmatprep.subr.bf16.mxu0 0
    %1399 = vmatpush1.bf16.msra.mxu0 0
    %1400 = vmatprep.subr.bf16.mxu0 0
    %1401 = vmatpush1.bf16.msra.mxu0 0
    %1402 = vmatprep.subr.bf16.mxu0 0
    %1403 = vmatpush1.bf16.msra.mxu0 0
    %1404 = vmatprep.subr.bf16.mxu0 0
    %1405 = vmatpush1.bf16.msra.mxu0 0
    %1406 = vmatprep.mubr.bf16.mxu0 0
    %1407 = vmatmul.mubr.bf16.gmra.mrb[0].mxu0 %v1372
    %v1408 = vpop.f32.mrb[0].mxu0
    %v1409 = vadd.f32 0.0, %v1408
    %v1410 = vpop.f32.mrb[0].mxu0
    %v1411 = vadd.f32 0.0, %v1410
    %v1412 = vpop.f32.mrb[0].mxu0
    %v1413 = vpop.f32.mrb[0].mxu0
    %1414 = vdwg.mxu0
    %v1417 = vrot.slane %v1409, 2
    %v1418 = vrot.slane %v1411, 2
    %v1421 = vadd.f32 %v1121, %v1417
    %v1422 = vadd.f32 %v1122, %v1418
    %v1423 = vxor.u32 %v1421, 2147483648
    %v1424 = vmul.f32 %v1423, 1.442695
    %v1425 = vpow.pop %v1424
    %v1426 = vadd.f32 %v1425, 1.0
    %v1427 = vrcp.pop %v1426
    %v1428 = vmul.f32 1.0, %v1427
    %v1429 = vtanh.pop %v1422
    %v1430 = vxor.u32 %v1422, 2147483648
    %v1431 = vmul.f32 %v1430, 1.442695
    %v1432 = vpow.pop %v1431
    %v1433 = vadd.f32 %v1432, 1.0
    %v1434 = vrcp.pop %v1433
    %v1435 = vmul.f32 1.0, %v1434
    %v1437 = vrot.slane %v1363, 6
    %v1439 = vmul.f32 %v1428, %v1437
    %v1440 = vmul.f32 %v1428, %v1429
    %1442 = vrot.lane.b32.xlu0 %v1440, 64
    %v1443 = vpop.permute.xlu0 %1442
    %v1445 = vadd.f32 %v1439, %v1443
    %v1446 = vtanh.pop %v1445
    %v1447 = vmul.f32 %v1435, %v1446
    %v1448 = vpack.c.bf16 %v1447, %v1447
    %v1450 = vrot.slane %v1448, 3
    %1451 = vrot.lane.b32.xlu0 %v1450, 64
    %v1452 = vpop.permute.xlu0 %1451
    %v1454 = vsel %vm294, %v1452, 0
    %1456 = vmatprep.subr.bf16.mxu0 %v1192
    %1457 = vmatpush1.bf16.msra.mxu0 %v1191
    %1458 = vmatprep.subr.bf16.mxu0 %v1194
    %1459 = vmatpush1.bf16.msra.mxu0 %v1193
    %1460 = vmatprep.subr.bf16.mxu0 %v1196
    %1461 = vmatpush1.bf16.msra.mxu0 %v1195
    %1462 = vmatprep.subr.bf16.mxu0 %v1198
    %1463 = vmatpush1.bf16.msra.mxu0 %v1197
    %1464 = vmatprep.subr.bf16.mxu0 0
    %1465 = vmatpush1.bf16.msra.mxu0 0
    %1466 = vmatprep.subr.bf16.mxu0 0
    %1467 = vmatpush1.bf16.msra.mxu0 0
    %1468 = vmatprep.subr.bf16.mxu0 0
    %1469 = vmatpush1.bf16.msra.mxu0 0
    %1470 = vmatprep.subr.bf16.mxu0 0
    %1471 = vmatpush1.bf16.msra.mxu0 0
    %1472 = vmatprep.subr.bf16.mxu0 0
    %1473 = vmatpush1.bf16.msra.mxu0 0
    %1474 = vmatprep.subr.bf16.mxu0 0
    %1475 = vmatpush1.bf16.msra.mxu0 0
    %1476 = vmatprep.subr.bf16.mxu0 0
    %1477 = vmatpush1.bf16.msra.mxu0 0
    %1478 = vmatprep.subr.bf16.mxu0 0
    %1479 = vmatpush1.bf16.msra.mxu0 0
    %1480 = vmatprep.subr.bf16.mxu0 0
    %1481 = vmatpush1.bf16.msra.mxu0 0
    %1482 = vmatprep.subr.bf16.mxu0 0
    %1483 = vmatpush1.bf16.msra.mxu0 0
    %1484 = vmatprep.subr.bf16.mxu0 0
    %1485 = vmatpush1.bf16.msra.mxu0 0
    %1486 = vmatprep.subr.bf16.mxu0 0
    %1487 = vmatpush1.bf16.msra.mxu0 0
    %1488 = vmatprep.mubr.bf16.mxu0 0
    %1489 = vmatmul.mubr.bf16.gmra.mrb[0].mxu0 %v1454
    %v1490 = vpop.f32.mrb[0].mxu0
    %v1491 = vadd.f32 0.0, %v1490
    %v1492 = vpop.f32.mrb[0].mxu0
    %v1493 = vadd.f32 0.0, %v1492
    %v1494 = vpop.f32.mrb[0].mxu0
    %v1495 = vpop.f32.mrb[0].mxu0
    %1496 = vdwg.mxu0
    %v1497 = vadd.f32 %v1131, %v1491
    %v1498 = vadd.f32 %v1132, %v1493
    %v1499 = vxor.u32 %v1497, 2147483648
    %v1500 = vmul.f32 %v1499, 1.442695
    %v1501 = vpow.pop %v1500
    %v1502 = vadd.f32 %v1501, 1.0
    %v1503 = vrcp.pop %v1502
    %v1504 = vmul.f32 1.0, %v1503
    %v1505 = vtanh.pop %v1498
    %v1506 = vxor.u32 %v1498, 2147483648
    %v1507 = vmul.f32 %v1506, 1.442695
    %v1508 = vpow.pop %v1507
    %v1509 = vadd.f32 %v1508, 1.0
    %v1510 = vrcp.pop %v1509
    %v1511 = vmul.f32 1.0, %v1510
    %v1513 = vrot.slane %v1445, 6
    %v1515 = vmul.f32 %v1504, %v1513
    %v1516 = vmul.f32 %v1504, %v1505
    %1518 = vrot.lane.b32.xlu0 %v1516, 64
    %v1519 = vpop.permute.xlu0 %1518
    %v1521 = vadd.f32 %v1515, %v1519
    %v1522 = vtanh.pop %v1521
    %v1523 = vmul.f32 %v1511, %v1522
    %v1524 = vpack.c.bf16 %v1523, %v1523
    %1526 = vrot.lane.b32.xlu0 %v1524, 64
    %v1527 = vpop.permute.xlu0 %1526
    %v1529 = vsel %vm294, %v1527, 0
    %1531 = vmatprep.subr.bf16.mxu0 %v1192
    %1532 = vmatpush1.bf16.msra.mxu0 %v1191
    %1533 = vmatprep.subr.bf16.mxu0 %v1194
    %1534 = vmatpush1.bf16.msra.mxu0 %v1193
    %1535 = vmatprep.subr.bf16.mxu0 %v1196
    %1536 = vmatpush1.bf16.msra.mxu0 %v1195
    %1537 = vmatprep.subr.bf16.mxu0 %v1198
    %1538 = vmatpush1.bf16.msra.mxu0 %v1197
    %1539 = vmatprep.subr.bf16.mxu0 0
    %1540 = vmatpush1.bf16.msra.mxu0 0
    %1541 = vmatprep.subr.bf16.mxu0 0
    %1542 = vmatpush1.bf16.msra.mxu0 0
    %1543 = vmatprep.subr.bf16.mxu0 0
    %1544 = vmatpush1.bf16.msra.mxu0 0
    %1545 = vmatprep.subr.bf16.mxu0 0
    %1546 = vmatpush1.bf16.msra.mxu0 0
    %1547 = vmatprep.subr.bf16.mxu0 0
    %1548 = vmatpush1.bf16.msra.mxu0 0
    %1549 = vmatprep.subr.bf16.mxu0 0
    %1550 = vmatpush1.bf16.msra.mxu0 0
    %1551 = vmatprep.subr.bf16.mxu0 0
    %1552 = vmatpush1.bf16.msra.mxu0 0
    %1553 = vmatprep.subr.bf16.mxu0 0
    %1554 = vmatpush1.bf16.msra.mxu0 0
    %1555 = vmatprep.subr.bf16.mxu0 0
    %1556 = vmatpush1.bf16.msra.mxu0 0
    %1557 = vmatprep.subr.bf16.mxu0 0
    %1558 = vmatpush1.bf16.msra.mxu0 0
    %1559 = vmatprep.subr.bf16.mxu0 0
    %1560 = vmatpush1.bf16.msra.mxu0 0
    %1561 = vmatprep.subr.bf16.mxu0 0
    %1562 = vmatpush1.bf16.msra.mxu0 0
    %1563 = vmatprep.mubr.bf16.mxu0 0
    %1564 = vmatmul.mubr.bf16.gmra.mrb[0].mxu0 %v1529
    %v1565 = vpop.f32.mrb[0].mxu0
    %v1566 = vadd.f32 0.0, %v1565
    %v1567 = vpop.f32.mrb[0].mxu0
    %v1568 = vadd.f32 0.0, %v1567
    %v1569 = vpop.f32.mrb[0].mxu0
    %v1570 = vpop.f32.mrb[0].mxu0
    %1571 = vdwg.mxu0
    %v1574 = vrot.slane %v1566, 6
    %v1575 = vrot.slane %v1568, 6
    %v1578 = vadd.f32 %v1139, %v1574
    %v1579 = vadd.f32 %v1140, %v1575
    %v1580 = vxor.u32 %v1578, 2147483648
    %v1581 = vmul.f32 %v1580, 1.442695
    %v1582 = vpow.pop %v1581
    %v1583 = vadd.f32 %v1582, 1.0
    %v1584 = vrcp.pop %v1583
    %v1585 = vmul.f32 1.0, %v1584
    %v1586 = vtanh.pop %v1579
    %v1587 = vxor.u32 %v1579, 2147483648
    %v1588 = vmul.f32 %v1587, 1.442695
    %v1589 = vpow.pop %v1588
    %v1590 = vadd.f32 %v1589, 1.0
    %v1591 = vrcp.pop %v1590
    %v1592 = vmul.f32 1.0, %v1591
    %v1594 = vrot.slane %v1521, 6
    %v1596 = vmul.f32 %v1585, %v1594
    %v1597 = vmul.f32 %v1585, %v1586
    %1599 = vrot.lane.b32.xlu0 %v1597, 64
    %v1600 = vpop.permute.xlu0 %1599
    %v1602 = vadd.f32 %v1596, %v1600
    %v1603 = vtanh.pop %v1602
    %v1604 = vmul.f32 %v1592, %v1603
    %v1605 = vpack.c.bf16 %v1604, %v1604
    %v1607 = vrot.slane %v1605, 1
    %1608 = vrot.lane.b32.xlu0 %v1607, 64
    %v1609 = vpop.permute.xlu0 %1608
    %v1611 = vsel %vm294, %v1609, 0
    %1613 = vmatprep.subr.bf16.mxu0 %v1192
    %1614 = vmatpush1.bf16.msra.mxu0 %v1191
    %1615 = vmatprep.subr.bf16.mxu0 %v1194
    %1616 = vmatpush1.bf16.msra.mxu0 %v1193
    %1617 = vmatprep.subr.bf16.mxu0 %v1196
    %1618 = vmatpush1.bf16.msra.mxu0 %v1195
    %1619 = vmatprep.subr.bf16.mxu0 %v1198
    %1620 = vmatpush1.bf16.msra.mxu0 %v1197
    %1621 = vmatprep.subr.bf16.mxu0 0
    %1622 = vmatpush1.bf16.msra.mxu0 0
    %1623 = vmatprep.subr.bf16.mxu0 0
    %1624 = vmatpush1.bf16.msra.mxu0 0
    %1625 = vmatprep.subr.bf16.mxu0 0
    %1626 = vmatpush1.bf16.msra.mxu0 0
    %1627 = vmatprep.subr.bf16.mxu0 0
    %1628 = vmatpush1.bf16.msra.mxu0 0
    %1629 = vmatprep.subr.bf16.mxu0 0
    %1630 = vmatpush1.bf16.msra.mxu0 0
    %1631 = vmatprep.subr.bf16.mxu0 0
    %1632 = vmatpush1.bf16.msra.mxu0 0
    %1633 = vmatprep.subr.bf16.mxu0 0
    %1634 = vmatpush1.bf16.msra.mxu0 0
    %1635 = vmatprep.subr.bf16.mxu0 0
    %1636 = vmatpush1.bf16.msra.mxu0 0
    %1637 = vmatprep.subr.bf16.mxu0 0
    %1638 = vmatpush1.bf16.msra.mxu0 0
    %1639 = vmatprep.subr.bf16.mxu0 0
    %1640 = vmatpush1.bf16.msra.mxu0 0
    %1641 = vmatprep.subr.bf16.mxu0 0
    %1642 = vmatpush1.bf16.msra.mxu0 0
    %1643 = vmatprep.subr.bf16.mxu0 0
    %1644 = vmatpush1.bf16.msra.mxu0 0
    %1645 = vmatprep.mubr.bf16.mxu0 0
    %1646 = vmatmul.mubr.bf16.gmra.mrb[0].mxu0 %v1611
    %v1647 = vpop.f32.mrb[0].mxu0
    %v1648 = vadd.f32 0.0, %v1647
    %v1649 = vpop.f32.mrb[0].mxu0
    %v1650 = vadd.f32 0.0, %v1649
    %v1651 = vpop.f32.mrb[0].mxu0
    %v1652 = vpop.f32.mrb[0].mxu0
    %1653 = vdwg.mxu0
    %v1656 = vrot.slane %v1648, 4
    %v1657 = vrot.slane %v1650, 4
    %v1660 = vadd.f32 %v1131, %v1656
    %v1661 = vadd.f32 %v1132, %v1657
    %v1662 = vxor.u32 %v1660, 2147483648
    %v1663 = vmul.f32 %v1662, 1.442695
    %v1664 = vpow.pop %v1663
    %v1665 = vadd.f32 %v1664, 1.0
    %v1666 = vrcp.pop %v1665
    %v1667 = vmul.f32 1.0, %v1666
    %v1668 = vtanh.pop %v1661
    %v1669 = vxor.u32 %v1661, 2147483648
    %v1670 = vmul.f32 %v1669, 1.442695
    %v1671 = vpow.pop %v1670
    %v1672 = vadd.f32 %v1671, 1.0
    %v1673 = vrcp.pop %v1672
    %v1674 = vmul.f32 1.0, %v1673
    %v1676 = vrot.slane %v1602, 6
    %v1678 = vmul.f32 %v1667, %v1676
    %v1679 = vmul.f32 %v1667, %v1668
    %1681 = vrot.lane.b32.xlu0 %v1679, 64
    %v1682 = vpop.permute.xlu0 %1681
    %v1684 = vadd.f32 %v1678, %v1682
    %v1685 = vtanh.pop %v1684
    %v1686 = vmul.f32 %v1674, %v1685
    %v1687 = vpack.c.bf16 %v1686, %v1686
    %v1689 = vrot.slane %v1687, 2
    %1690 = vrot.lane.b32.xlu0 %v1689, 64
    %v1691 = vpop.permute.xlu0 %1690
    %v1693 = vsel %vm294, %v1691, 0
    %1695 = vmatprep.subr.bf16.mxu0 %v1192
    %1696 = vmatpush1.bf16.msra.mxu0 %v1191
    %1697 = vmatprep.subr.bf16.mxu0 %v1194
    %1698 = vmatpush1.bf16.msra.mxu0 %v1193
    %1699 = vmatprep.subr.bf16.mxu0 %v1196
    %1700 = vmatpush1.bf16.msra.mxu0 %v1195
    %1701 = vmatprep.subr.bf16.mxu0 %v1198
    %1702 = vmatpush1.bf16.msra.mxu0 %v1197
    %1703 = vmatprep.subr.bf16.mxu0 0
    %1704 = vmatpush1.bf16.msra.mxu0 0
    %1705 = vmatprep.subr.bf16.mxu0 0
    %1706 = vmatpush1.bf16.msra.mxu0 0
    %1707 = vmatprep.subr.bf16.mxu0 0
    %1708 = vmatpush1.bf16.msra.mxu0 0
    %1709 = vmatprep.subr.bf16.mxu0 0
    %1710 = vmatpush1.bf16.msra.mxu0 0
    %1711 = vmatprep.subr.bf16.mxu0 0
    %1712 = vmatpush1.bf16.msra.mxu0 0
    %1713 = vmatprep.subr.bf16.mxu0 0
    %1714 = vmatpush1.bf16.msra.mxu0 0
    %1715 = vmatprep.subr.bf16.mxu0 0
    %1716 = vmatpush1.bf16.msra.mxu0 0
    %1717 = vmatprep.subr.bf16.mxu0 0
    %1718 = vmatpush1.bf16.msra.mxu0 0
    %1719 = vmatprep.subr.bf16.mxu0 0
    %1720 = vmatpush1.bf16.msra.mxu0 0
    %1721 = vmatprep.subr.bf16.mxu0 0
    %1722 = vmatpush1.bf16.msra.mxu0 0
    %1723 = vmatprep.subr.bf16.mxu0 0
    %1724 = vmatpush1.bf16.msra.mxu0 0
    %1725 = vmatprep.subr.bf16.mxu0 0
    %1726 = vmatpush1.bf16.msra.mxu0 0
    %1727 = vmatprep.mubr.bf16.mxu0 0
    %1728 = vmatmul.mubr.bf16.gmra.mrb[0].mxu0 %v1693
    %v1729 = vpop.f32.mrb[0].mxu0
    %v1730 = vadd.f32 0.0, %v1729
    %v1731 = vpop.f32.mrb[0].mxu0
    %v1732 = vadd.f32 0.0, %v1731
    %v1733 = vpop.f32.mrb[0].mxu0
    %v1734 = vpop.f32.mrb[0].mxu0
    %1735 = vdwg.mxu0
    %v1738 = vrot.slane %v1730, 2
    %v1739 = vrot.slane %v1732, 2
    %v1742 = vadd.f32 %v1139, %v1738
    %v1743 = vadd.f32 %v1140, %v1739
    %v1744 = vxor.u32 %v1742, 2147483648
    %v1745 = vmul.f32 %v1744, 1.442695
    %v1746 = vpow.pop %v1745
    %v1747 = vadd.f32 %v1746, 1.0
    %v1748 = vrcp.pop %v1747
    %v1749 = vmul.f32 1.0, %v1748
    %v1750 = vtanh.pop %v1743
    %v1751 = vxor.u32 %v1743, 2147483648
    %v1752 = vmul.f32 %v1751, 1.442695
    %v1753 = vpow.pop %v1752
    %v1754 = vadd.f32 %v1753, 1.0
    %v1755 = vrcp.pop %v1754
    %v1756 = vmul.f32 1.0, %v1755
    %v1758 = vrot.slane %v1684, 6
    %v1760 = vmul.f32 %v1749, %v1758
    %v1761 = vmul.f32 %v1749, %v1750
    %1763 = vrot.lane.b32.xlu0 %v1761, 64
    %v1764 = vpop.permute.xlu0 %1763
    %v1766 = vadd.f32 %v1760, %v1764
    %v1767 = vtanh.pop %v1766
    %v1768 = vmul.f32 %v1756, %v1767
    %v1769 = vld [vmem:[#allocation6] sm:$0xff]
    %v1770 = vld [vmem:[#allocation6 + $0x8] sm:$0xff]
    %v1771 = vld [vmem:[#allocation6 + $0x10] sm:$0xff]
    %v1772 = vld [vmem:[#allocation6 + $0x18] sm:$0xff]
    %v1773 = vld [vmem:[#allocation6 + $0x20] sm:$0xff]
    %v1774 = vld [vmem:[#allocation6 + $0x28] sm:$0xff]
    %v1775 = vld [vmem:[#allocation6 + $0x30] sm:$0xff]
    %v1776 = vld [vmem:[#allocation6 + $0x38] sm:$0xff]
    %1778 = vrot.lane.b32.xlu0 %v1162, 32
    %v1779 = vpop.permute.xlu0 %1778
    %vm1780 = vcmask 261120
    %v1781 = vsel %vm1780, %v1779, 0
    %1783 = vmatprep.subr.mxu0 0.0
    %1784 = vmatpush1.msra.mxu0 %v1773
    %1785 = vmatprep.subr.mxu0 0.0
    %1786 = vmatpush1.msra.mxu0 %v1774
    %1787 = vmatprep.subr.mxu0 0.0
    %1788 = vmatpush1.msra.mxu0 %v1775
    %1789 = vmatprep.subr.mxu0 0.0
    %1790 = vmatpush1.msra.mxu0 %v1776
    %1791 = vmatprep.subr.mxu0 0.0
    %1792 = vmatpush1.msra.mxu0 0.0
    %1793 = vmatprep.subr.mxu0 0.0
    %1794 = vmatpush1.msra.mxu0 0.0
    %1795 = vmatprep.subr.mxu0 0.0
    %1796 = vmatpush1.msra.mxu0 0.0
    %1797 = vmatprep.subr.mxu0 0.0
    %1798 = vmatpush1.msra.mxu0 0.0
    %1799 = vmatprep.subr.mxu0 0.0
    %1800 = vmatpush1.msra.mxu0 0.0
    %1801 = vmatprep.subr.mxu0 0.0
    %1802 = vmatpush1.msra.mxu0 0.0
    %1803 = vmatprep.subr.mxu0 0.0
    %1804 = vmatpush1.msra.mxu0 0.0
    %1805 = vmatprep.subr.mxu0 0.0
    %1806 = vmatpush1.msra.mxu0 0.0
    %1807 = vmatprep.subr.mxu0 0.0
    %1808 = vmatpush1.msra.mxu0 0.0
    %1809 = vmatprep.subr.mxu0 0.0
    %1810 = vmatpush1.msra.mxu0 0.0
    %1811 = vmatprep.subr.mxu0 0.0
    %1812 = vmatpush1.msra.mxu0 0.0
    %1813 = vmatprep.subr.mxu0 0.0
    %1814 = vmatpush1.msra.mxu0 0.0
    %1815 = vmatprep.subr.mxu0 0.0
    %1816 = vmatpush1.msra.mxu0 0.0
    %1817 = vmatprep.subr.mxu0 0.0
    %1818 = vmatpush1.msra.mxu0 0.0
    %1819 = vmatprep.subr.mxu0 0.0
    %1820 = vmatpush1.msra.mxu0 0.0
    %1821 = vmatprep.subr.mxu0 0.0
    %1822 = vmatpush1.msra.mxu0 0.0
    %1823 = vmatprep.subr.mxu0 0.0
    %1824 = vmatpush1.msra.mxu0 0.0
    %1825 = vmatprep.subr.mxu0 0.0
    %1826 = vmatpush1.msra.mxu0 0.0
    %1827 = vmatprep.subr.mxu0 0.0
    %1828 = vmatpush1.msra.mxu0 0.0
    %1829 = vmatprep.subr.mxu0 0.0
    %1830 = vmatpush1.msra.mxu0 0.0
    %1831 = vmatprep.subr.mxu0 0.0
    %1832 = vmatpush1.msra.mxu0 0.0
    %1833 = vmatprep.subr.mxu0 0.0
    %1834 = vmatpush1.msra.mxu0 0.0
    %1835 = vmatprep.subr.mxu0 0.0
    %1836 = vmatpush1.msra.mxu0 0.0
    %1837 = vmatprep.subr.mxu0 0.0
    %1838 = vmatpush1.msra.mxu0 0.0
    %1839 = vmatprep.subr.mxu0 0.0
    %1840 = vmatpush1.msra.mxu0 0.0
    %1841 = vmatprep.subr.mxu0 0.0
    %1842 = vmatpush1.msra.mxu0 0.0
    %1843 = vmatprep.subr.mxu0 0.0
    %1844 = vmatpush1.msra.mxu0 0.0
    %1845 = vmatprep.subr.mxu0 0.0
    %1846 = vmatpush1.msra.mxu0 0.0
    %1847 = vmatprep.mubr.f32.mxu0 0.0
    %1848 = vmatmul.mubr.f32.gmra.mrb[0].mxu0 %v1781
    %v1849 = vpop.f32.mrb[0].mxu0
    %v1850 = vadd.f32 0.0, %v1849
    %v1851 = vpop.f32.mrb[0].mxu0
    %1852 = vdwg.mxu0
    %v1854 = vrot.slane %v1768, 6
    %1855 = vrot.lane.b32.xlu0 %v1854, 64
    %v1856 = vpop.permute.xlu0 %1855
    %v1857 = vsel %vm1780, %v1856, 0
    %1859 = vmatprep.subr.mxu0 0.0
    %1860 = vmatpush1.msra.mxu0 %v1769
    %1861 = vmatprep.subr.mxu0 0.0
    %1862 = vmatpush1.msra.mxu0 %v1770
    %1863 = vmatprep.subr.mxu0 0.0
    %1864 = vmatpush1.msra.mxu0 %v1771
    %1865 = vmatprep.subr.mxu0 0.0
    %1866 = vmatpush1.msra.mxu0 %v1772
    %1867 = vmatprep.subr.mxu0 0.0
    %1868 = vmatpush1.msra.mxu0 0.0
    %1869 = vmatprep.subr.mxu0 0.0
    %1870 = vmatpush1.msra.mxu0 0.0
    %1871 = vmatprep.subr.mxu0 0.0
    %1872 = vmatpush1.msra.mxu0 0.0
    %1873 = vmatprep.subr.mxu0 0.0
    %1874 = vmatpush1.msra.mxu0 0.0
    %1875 = vmatprep.subr.mxu0 0.0
    %1876 = vmatpush1.msra.mxu0 0.0
    %1877 = vmatprep.subr.mxu0 0.0
    %1878 = vmatpush1.msra.mxu0 0.0
    %1879 = vmatprep.subr.mxu0 0.0
    %1880 = vmatpush1.msra.mxu0 0.0
    %1881 = vmatprep.subr.mxu0 0.0
    %1882 = vmatpush1.msra.mxu0 0.0
    %1883 = vmatprep.subr.mxu0 0.0
    %1884 = vmatpush1.msra.mxu0 0.0
    %1885 = vmatprep.subr.mxu0 0.0
    %1886 = vmatpush1.msra.mxu0 0.0
    %1887 = vmatprep.subr.mxu0 0.0
    %1888 = vmatpush1.msra.mxu0 0.0
    %1889 = vmatprep.subr.mxu0 0.0
    %1890 = vmatpush1.msra.mxu0 0.0
    %1891 = vmatprep.subr.mxu0 0.0
    %1892 = vmatpush1.msra.mxu0 0.0
    %1893 = vmatprep.subr.mxu0 0.0
    %1894 = vmatpush1.msra.mxu0 0.0
    %1895 = vmatprep.subr.mxu0 0.0
    %1896 = vmatpush1.msra.mxu0 0.0
    %1897 = vmatprep.subr.mxu0 0.0
    %1898 = vmatpush1.msra.mxu0 0.0
    %1899 = vmatprep.subr.mxu0 0.0
    %1900 = vmatpush1.msra.mxu0 0.0
    %1901 = vmatprep.subr.mxu0 0.0
    %1902 = vmatpush1.msra.mxu0 0.0
    %1903 = vmatprep.subr.mxu0 0.0
    %1904 = vmatpush1.msra.mxu0 0.0
    %1905 = vmatprep.subr.mxu0 0.0
    %1906 = vmatpush1.msra.mxu0 0.0
    %1907 = vmatprep.subr.mxu0 0.0
    %1908 = vmatpush1.msra.mxu0 0.0
    %1909 = vmatprep.subr.mxu0 0.0
    %1910 = vmatpush1.msra.mxu0 0.0
    %1911 = vmatprep.subr.mxu0 0.0
    %1912 = vmatpush1.msra.mxu0 0.0
    %1913 = vmatprep.subr.mxu0 0.0
    %1914 = vmatpush1.msra.mxu0 0.0
    %1915 = vmatprep.subr.mxu0 0.0
    %1916 = vmatpush1.msra.mxu0 0.0
    %1917 = vmatprep.subr.mxu0 0.0
    %1918 = vmatpush1.msra.mxu0 0.0
    %1919 = vmatprep.subr.mxu0 0.0
    %1920 = vmatpush1.msra.mxu0 0.0
    %1921 = vmatprep.subr.mxu0 0.0
    %1922 = vmatpush1.msra.mxu0 0.0
    %1923 = vmatprep.mubr.f32.mxu0 0.0
    %1924 = vmatmul.mubr.f32.gmra.mrb[0].mxu0 %v1857
    %v1925 = vpop.f32.mrb[0].mxu0
    %v1926 = vadd.f32 %v1850, %v1925
    %v1927 = vpop.f32.mrb[0].mxu0
    %1928 = vdwg.mxu0
    %v1929 = vld [vmem:[#allocation6 + $0x40] sm:$0x1]
    %v1930 = vlaneseq
    %v1931 = vshrl.u32 %v1930, 7
    %v1932 = vsub.s32 0, %v1931
    %v1933 = vrot.slane %v1929, %v1932
    %v1934 = vadd.f32 %v1926, %v1933
    %v1935 = vmax.f32 %v1934, 0.0
    %v1936 = vld [vmem:[#allocation6 + $0x48] sm:$0xff]
    %v1937 = vld [vmem:[#allocation6 + $0x50] sm:$0xff]
    %v1938 = vld [vmem:[#allocation6 + $0x58] sm:$0xff]
    %v1939 = vld [vmem:[#allocation6 + $0x60] sm:$0xff]
    %v1940 = vld [vmem:[#allocation6 + $0x68] sm:$0xff]
    %v1941 = vld [vmem:[#allocation6 + $0x70] sm:$0xff]
    %v1942 = vld [vmem:[#allocation6 + $0x78] sm:$0x1]
    %v1943 = vlaneseq
    %v1944 = vshrl.u32 %v1943, 7
    %v1945 = vsub.s32 0, %v1944
    %v1946 = vrot.slane %v1942, %v1945
    %vm1947 = vcmask 392192
    %v1949 = vsel %vm1947, %v1935, 0
    %1951 = vmatprep.subr.mxu0 0.0
    %1952 = vmatpush1.msra.mxu0 %v1936
    %1953 = vmatprep.subr.mxu0 0.0
    %1954 = vmatpush1.msra.mxu0 %v1937
    %1955 = vmatprep.subr.mxu0 0.0
    %1956 = vmatpush1.msra.mxu0 %v1938
    %1957 = vmatprep.subr.mxu0 0.0
    %1958 = vmatpush1.msra.mxu0 %v1939
    %1959 = vmatprep.subr.mxu0 0.0
    %1960 = vmatpush1.msra.mxu0 %v1940
    %1961 = vmatprep.subr.mxu0 0.0
    %1962 = vmatpush1.msra.mxu0 %v1941
    %1963 = vmatprep.subr.mxu0 0.0
    %1964 = vmatpush1.msra.mxu0 0.0
    %1965 = vmatprep.subr.mxu0 0.0
    %1966 = vmatpush1.msra.mxu0 0.0
    %1967 = vmatprep.subr.mxu0 0.0
    %1968 = vmatpush1.msra.mxu0 0.0
    %1969 = vmatprep.subr.mxu0 0.0
    %1970 = vmatpush1.msra.mxu0 0.0
    %1971 = vmatprep.subr.mxu0 0.0
    %1972 = vmatpush1.msra.mxu0 0.0
    %1973 = vmatprep.subr.mxu0 0.0
    %1974 = vmatpush1.msra.mxu0 0.0
    %1975 = vmatprep.subr.mxu0 0.0
    %1976 = vmatpush1.msra.mxu0 0.0
    %1977 = vmatprep.subr.mxu0 0.0
    %1978 = vmatpush1.msra.mxu0 0.0
    %1979 = vmatprep.subr.mxu0 0.0
    %1980 = vmatpush1.msra.mxu0 0.0
    %1981 = vmatprep.subr.mxu0 0.0
    %1982 = vmatpush1.msra.mxu0 0.0
    %1983 = vmatprep.subr.mxu0 0.0
    %1984 = vmatpush1.msra.mxu0 0.0
    %1985 = vmatprep.subr.mxu0 0.0
    %1986 = vmatpush1.msra.mxu0 0.0
    %1987 = vmatprep.subr.mxu0 0.0
    %1988 = vmatpush1.msra.mxu0 0.0
    %1989 = vmatprep.subr.mxu0 0.0
    %1990 = vmatpush1.msra.mxu0 0.0
    %1991 = vmatprep.subr.mxu0 0.0
    %1992 = vmatpush1.msra.mxu0 0.0
    %1993 = vmatprep.subr.mxu0 0.0
    %1994 = vmatpush1.msra.mxu0 0.0
    %1995 = vmatprep.subr.mxu0 0.0
    %1996 = vmatpush1.msra.mxu0 0.0
    %1997 = vmatprep.subr.mxu0 0.0
    %1998 = vmatpush1.msra.mxu0 0.0
    %1999 = vmatprep.subr.mxu0 0.0
    %2000 = vmatpush1.msra.mxu0 0.0
    %2001 = vmatprep.subr.mxu0 0.0
    %2002 = vmatpush1.msra.mxu0 0.0
    %2003 = vmatprep.subr.mxu0 0.0
    %2004 = vmatpush1.msra.mxu0 0.0
    %2005 = vmatprep.subr.mxu0 0.0
    %2006 = vmatpush1.msra.mxu0 0.0
    %2007 = vmatprep.subr.mxu0 0.0
    %2008 = vmatpush1.msra.mxu0 0.0
    %2009 = vmatprep.subr.mxu0 0.0
    %2010 = vmatpush1.msra.mxu0 0.0
    %2011 = vmatprep.subr.mxu0 0.0
    %2012 = vmatpush1.msra.mxu0 0.0
    %2013 = vmatprep.subr.mxu0 0.0
    %2014 = vmatpush1.msra.mxu0 0.0
    %2015 = vmatprep.mubr.f32.mxu0 0.0
    %2016 = vmatmul.mubr.f32.gmra.mrb[0].mxu0 %v1949
    %v2017 = vpop.f32.mrb[0].mxu0
    %v2018 = vadd.f32 %v1946, %v2017
    %v2019 = vpop.f32.mrb[0].mxu0
    %2020 = vdwg.mxu0
    %vm2021 = vcmask 33792
    %2022 = vst.msk [vmem:[#allocation8] sm:$0x3] %vm2021, %v2018
    // Predicated region
    $region26: #{lstm_estimator_forward.1} parent=1 // pred_check
      _
    $region27: #{lstm_estimator_forward.1} parent=1 // pred_check_branch
      %2024 = sbr.rel (0) target = $region29
    $region28: #{lstm_estimator_forward.1} parent=1 // pred_region
      %s2026 = ssub.s32 32, 32
      %2027 = vsyncadd [#allocation5], %s2026
      %s2029 = sshll.u32 [#allocation8], 4
      %s2030 = int_to_ptr.vmem [resolvable:$true] %s2029
      %2032 = dma.vmem_to_hbm [thread:$0]  %s2030, 32, %s4, [#allocation5]
    $region29: #{lstm_estimator_forward.1} parent=1 // pred_fallthru
      _
    // Predicated region
    $region30: #{lstm_estimator_forward.1} parent=1 // pred_check
      _
    $region31: #{lstm_estimator_forward.1} parent=1 // pred_check_branch
      %2034 = sbr.rel (0) target = $region33
    $region32: #{lstm_estimator_forward.1} parent=1 // pred_region
      %2035 = dma.done [#allocation5], 32
    $region33: #{lstm_estimator_forward.1} parent=1 // pred_fallthru
      _
    %2036 = vsyncpa [#allocation4], 1
    %2037 = vsyncpa [#allocation7], 1
    %2038 = vsyncpa [#allocation5], 1

</llo_original>
